<compile_context>
chip_gen: v5e
topology: v5e:2x2
jax: 0.10.0
libtpu: 0.0.40
codegen_flags: <defaults>
</compile_context>

<pallas_src>
import jax
import jax.numpy as jnp
from jax import lax
from jax.experimental import pallas as pl
from jax.experimental.pallas import tpu as pltpu


def make_sentiment_kernel(n_layers, T, BP, E, H, O):
    def kernel(*refs):
        emb_ref, h0_ref, c0_ref = refs[0], refs[1], refs[2]
        layer_refs = refs[3:3 + 3 * n_layers]
        fcw_ref = refs[3 + 3 * n_layers]      # (H, O)   pre-transposed
        fcb_ref = refs[4 + 3 * n_layers]      # (1, O)
        out_ref = refs[5 + 3 * n_layers]      # (BP, O)
        hn_ref = refs[6 + 3 * n_layers]       # (L, BP, H)
        cn_ref = refs[7 + 3 * n_layers]       # (L, BP, H)
        gx_ref = refs[8 + 3 * n_layers]       # (T*BP, 4H) scratch: hoisted input proj
        seq_ref = refs[9 + 3 * n_layers]      # (T*BP, H)  scratch: inter-layer sequence

        h_last = None
        for l in range(n_layers):
            w_ih = layer_refs[3 * l][...]       # (in, 4H) pre-transposed, g-cols *2
            w_hh = layer_refs[3 * l + 1][...]   # (H, 4H)  pre-transposed, g-cols *2
            bias = layer_refs[3 * l + 2][...]   # (1, 4H) == b_ih + b_hh, g-cols *2

            # Hoisted input projection for ALL timesteps of this layer: one matmul,
            # bias folded in (no per-step broadcast / add on the critical path).
            x2d = emb_ref[...] if l == 0 else seq_ref[...]          # (T*BP, in)
            gx_ref[...] = (jnp.dot(x2d, w_ih, preferred_element_type=jnp.float32)
                           + bias)                                  # (T*BP, 4H)

            is_last_layer = (l == n_layers - 1)
            h = h0_ref[l]                                           # (BP, H)
            c = c0_ref[l]                                           # (BP, H)

            # Fully unrolled recurrence (T static, small). Per serialized step:
            # recurrent matmul + ONE full-vreg sigmoid + ONE tanh + VPU gate math.
            for t in range(T):
                gates = (gx_ref[pl.ds(t * BP, BP), :]               # aligned 8-row tile
                         + jnp.dot(h, w_hh, preferred_element_type=jnp.float32))
                s = jax.nn.sigmoid(gates)                           # (BP, 4H), 1 EUP push
                i = s[:, 0 * H:1 * H]
                f = s[:, 1 * H:2 * H]
                g = 2.0 * s[:, 2 * H:3 * H] - 1.0                   # == tanh(z); z pre-scaled by 2
                o = s[:, 3 * H:4 * H]
                c = f * c + i * g
                h = o * jnp.tanh(c)
                if not is_last_layer:
                    seq_ref[pl.ds(t * BP, BP), :] = h               # feed next layer

            hn_ref[l] = h
            cn_ref[l] = c
            h_last = h

        # lstm_out[:, -1] of the top layer -> fc1 -> LogSoftmax(dim=1).
        # (nn.Dropout in the reference forward is applied to a value that is then
        #  discarded, so it is a no-op and not implemented.)
        logits = (jnp.dot(h_last, fcw_ref[...], preferred_element_type=jnp.float32)
                  + fcb_ref[...])                                   # (BP, O)
        m = jnp.max(logits, axis=1, keepdims=True)
        z = logits - m
        lse = jnp.log(jnp.sum(jnp.exp(z), axis=1, keepdims=True))
        out_ref[...] = z - lse

    return kernel


def sentiment_forward(tokens, hidden, params, *, n_layers, hidden_dim, output_size):
    """JAX wrapper: embedding gather (glue) + Pallas kernel for the hot path."""
    emb_table = params["emb"]                # (V, E)
    h0, c0 = hidden                          # (L, B, H) each
    B, T = tokens.shape
    E = emb_table.shape[1]
    H = hidden_dim
    O = output_size

    # Pad batch to the 8-row sublane tile so every per-step slice in the kernel
    # is a full aligned vreg tile; padded rows are discarded after the call.
    BP = max(8, ((B + 7) // 8) * 8)

    # Time-major gather on the int32 ids (tiny transpose), not on float embeddings:
    # row (t*BP + b) of embeds_flat = emb_table[tokens[b, t]].
    tok_pad = jnp.zeros((BP, T), tokens.dtype).at[:B].set(tokens)
    embeds_flat = jnp.take(emb_table, tok_pad.T.reshape(-1), axis=0).astype(jnp.float32)  # (T*BP, E)

    h0p = jnp.zeros((n_layers, BP, H), jnp.float32).at[:, :B].set(h0.astype(jnp.float32))
    c0p = jnp.zeros((n_layers, BP, H), jnp.float32).at[:, :B].set(c0.astype(jnp.float32))

    inputs = [embeds_flat, h0p, c0p]
    flops = 0
    # Pre-scale the g-gate (cell-candidate) columns by 2 so the kernel can use a
    # single full-vreg sigmoid per step: tanh(z) = 2*sigmoid(2z) - 1.
    gscale = jnp.ones((4 * H,), jnp.float32).at[2 * H:3 * H].set(2.0)
    for l, (w_ih, w_hh, b_ih, b_hh) in enumerate(params["layers"]):
        in_dim = E if l == 0 else H
        # Pre-transpose weights in the wrapper (free at trace time) so the kernel
        # does no XLU transposes and the matmul RHS is lane-dense.
        inputs += [w_ih.T * gscale[None, :],
                   w_hh.T * gscale[None, :],
                   ((b_ih + b_hh) * gscale)[None, :]]
        flops += 2 * T * BP * (in_dim + H) * 4 * H
    inputs += [params["fc_w"].T, params["fc_b"][None, :]]
    flops += 2 * BP * H * O

    kernel = make_sentiment_kernel(n_layers, T, BP, E, H, O)
    vmem = pl.BlockSpec(memory_space=pltpu.MemorySpace.VMEM)

    out_shapes = (
        jax.ShapeDtypeStruct((BP, O), jnp.float32),            # log-softmax output (padded)
        jax.ShapeDtypeStruct((n_layers, BP, H), jnp.float32),  # h_n (padded)
        jax.ShapeDtypeStruct((n_layers, BP, H), jnp.float32),  # c_n (padded)
    )

    bytes_accessed = 4 * (sum(int(x.size) for x in inputs)
                          + BP * O + 2 * n_layers * BP * H)
    transcendentals = n_layers * T * BP * 5 * H + 2 * BP * O

    log_soft, hn, cn = pl.pallas_call(
        kernel,
        out_shape=out_shapes,
        in_specs=[vmem] * len(inputs),
        out_specs=(vmem, vmem, vmem),
        scratch_shapes=[
            pltpu.VMEM((T * BP, 4 * H), jnp.float32),   # hoisted input projections
            pltpu.VMEM((T * BP, H), jnp.float32),       # inter-layer hidden sequence
        ],
        compiler_params=pltpu.CompilerParams(vmem_limit_bytes=32 << 20),
        cost_estimate=pl.CostEstimate(flops=flops,
                                      transcendentals=transcendentals,
                                      bytes_accessed=bytes_accessed),
    )(*inputs)

    # Drop sublane padding.
    return log_soft[:B], (hn[:, :B], cn[:, :B])


def reference_forward(tokens, hidden, params, n_layers, H):
    """Pure-JAX reference mirroring the PyTorch forward (for correctness check)."""
    emb = jnp.take(params["emb"], tokens, axis=0)        # (B, T, E)
    h0, c0 = hidden
    x = emb
    hs, cs = [], []
    for l, (w_ih, w_hh, b_ih, b_hh) in enumerate(params["layers"]):
        h, c = h0[l], c0[l]
        outs = []
        for t in range(x.shape[1]):
            gates = x[:, t] @ w_ih.T + b_ih + h @ w_hh.T + b_hh
            i = jax.nn.sigmoid(gates[:, :H])
            f = jax.nn.sigmoid(gates[:, H:2 * H])
            g = jnp.tanh(gates[:, 2 * H:3 * H])
            o = jax.nn.sigmoid(gates[:, 3 * H:])
            c = f * c + i * g
            h = o * jnp.tanh(c)
            outs.append(h)
        x = jnp.stack(outs, axis=1)
        hs.append(h)
        cs.append(c)
    last = x[:, -1]
    logits = last @ params["fc_w"].T + params["fc_b"]
    log_soft = jax.nn.log_softmax(logits, axis=1)
    return log_soft, (jnp.stack(hs), jnp.stack(cs))


def init_params(key, vocab_size, embedding_dim, hidden_dim, n_layers, output_size):
    """Deterministic synthetic parameters with PyTorch-like shapes."""
    keys = jax.random.split(key, 2 + 4 * n_layers + 2)
    k = iter(keys)
    scale = 1.0 / jnp.sqrt(hidden_dim)
    params = {
        "emb": jax.random.normal(next(k), (vocab_size, embedding_dim), jnp.float32),
        "layers": [],
    }
    for l in range(n_layers):
        in_dim = embedding_dim if l == 0 else hidden_dim
        w_ih = jax.random.uniform(next(k), (4 * hidden_dim, in_dim), jnp.float32, -scale, scale)
        w_hh = jax.random.uniform(next(k), (4 * hidden_dim, hidden_dim), jnp.float32, -scale, scale)
        b_ih = jax.random.uniform(next(k), (4 * hidden_dim,), jnp.float32, -scale, scale)
        b_hh = jax.random.uniform(next(k), (4 * hidden_dim,), jnp.float32, -scale, scale)
        params["layers"].append((w_ih, w_hh, b_ih, b_hh))
    params["fc_w"] = jax.random.uniform(next(k), (output_size, hidden_dim), jnp.float32, -scale, scale)
    params["fc_b"] = jax.random.uniform(next(k), (output_size,), jnp.float32, -scale, scale)
    return params


if __name__ == "__main__":
    vocab_size = 50
    output_size = 5
    embedding_dim = 32
    hidden_dim = 32
    n_layers = 2
    batch_size = 2
    seq_len = 8

    key = jax.random.PRNGKey(0)
    k_tok, k_par = jax.random.split(key)

    tokens = jax.random.randint(k_tok, (batch_size, seq_len), 0, vocab_size, dtype=jnp.int32)
    params = init_params(k_par, vocab_size, embedding_dim, hidden_dim, n_layers, output_size)

    # init_hidden: zeros of shape (n_layers, batch, hidden_dim)
    hidden = (
        jnp.zeros((n_layers, batch_size, hidden_dim), jnp.float32),
        jnp.zeros((n_layers, batch_size, hidden_dim), jnp.float32),
    )

    log_soft, (hn, cn) = sentiment_forward(
        tokens, hidden, params,
        n_layers=n_layers, hidden_dim=hidden_dim, output_size=output_size,
    )
    jax.block_until_ready((log_soft, hn, cn))

    ref_out, (ref_hn, ref_cn) = reference_forward(tokens, hidden, params, n_layers, hidden_dim)
    # tanh(z)=2*sigmoid(2z)-1 rewrite uses a different EUP path than tanh; allow
    # a slightly looser (still tight, all-f32) tolerance.
    assert jnp.allclose(log_soft, ref_out, atol=1e-4), "log-softmax output mismatch"
    assert jnp.allclose(hn, ref_hn, atol=1e-4), "h_n mismatch"
    assert jnp.allclose(cn, ref_cn, atol=1e-4), "c_n mismatch"

    print("KERNEL_OK")
</pallas_src>

<mosaic_0001>
module attributes {stable_mosaic.version = 11 : i64} {
  func.func @kernel(%arg0: memref<64x32xf32, #tpu.memory_space<vmem>>, %arg1: memref<2x8x32xf32, #tpu.memory_space<vmem>>, %arg2: memref<2x8x32xf32, #tpu.memory_space<vmem>>, %arg3: memref<32x128xf32, #tpu.memory_space<vmem>>, %arg4: memref<32x128xf32, #tpu.memory_space<vmem>>, %arg5: memref<1x128xf32, #tpu.memory_space<vmem>>, %arg6: memref<32x128xf32, #tpu.memory_space<vmem>>, %arg7: memref<32x128xf32, #tpu.memory_space<vmem>>, %arg8: memref<1x128xf32, #tpu.memory_space<vmem>>, %arg9: memref<32x5xf32, #tpu.memory_space<vmem>>, %arg10: memref<1x5xf32, #tpu.memory_space<vmem>>, %arg11: memref<8x5xf32, #tpu.memory_space<vmem>>, %arg12: memref<2x8x32xf32, #tpu.memory_space<vmem>>, %arg13: memref<2x8x32xf32, #tpu.memory_space<vmem>>, %arg14: memref<64x128xf32, #tpu.memory_space<vmem>>, %arg15: memref<64x32xf32, #tpu.memory_space<vmem>>) attributes {dimension_semantics = [], scalar_prefetch = 0 : i64, scratch_operands = 2 : i64, tpu.core_type = #tpu.core_type<tc>} {
    %c0 = arith.constant 0 : index
    %c0_0 = arith.constant 0 : index
    %0 = vector.load %arg3[%c0, %c0_0] : memref<32x128xf32, #tpu.memory_space<vmem>>, vector<32x128xf32>
    %c0_1 = arith.constant 0 : index
    %c0_2 = arith.constant 0 : index
    %1 = vector.load %arg4[%c0_1, %c0_2] : memref<32x128xf32, #tpu.memory_space<vmem>>, vector<32x128xf32>
    %c0_3 = arith.constant 0 : index
    %c0_4 = arith.constant 0 : index
    %2 = vector.load %arg5[%c0_3, %c0_4] : memref<1x128xf32, #tpu.memory_space<vmem>>, vector<1x128xf32>
    %c0_5 = arith.constant 0 : index
    %c0_6 = arith.constant 0 : index
    %3 = vector.load %arg0[%c0_5, %c0_6] : memref<64x32xf32, #tpu.memory_space<vmem>>, vector<64x32xf32>
    %cst = arith.constant dense<0.000000e+00> : vector<64x128xf32>
    %4 = tpu.matmul %3, %0, %cst {dimension_numbers = #tpu.dot_dimension_numbers<[1], [0], [0], [1], [0, 0, 1, 1], [], []>} : vector<64x32xf32>, vector<32x128xf32>, vector<64x128xf32> -> vector<64x128xf32>
    %5 = vector.broadcast %2 : vector<1x128xf32> to vector<64x128xf32>
    %6 = arith.addf %4, %5 : vector<64x128xf32>
    %c0_7 = arith.constant 0 : index
    %c0_8 = arith.constant 0 : index
    %7 = vector.load %arg14[%c0_7, %c0_8] : memref<64x128xf32, #tpu.memory_space<vmem>>, vector<64x128xf32>
    tpu.vector_store %arg14[%c0_7, %c0_8], %6 {strides = array<i32>} : memref<64x128xf32, #tpu.memory_space<vmem>>, vector<64x128xf32>,
    %c0_9 = arith.constant 0 : index
    %c0_10 = arith.constant 0 : index
    %c0_11 = arith.constant 0 : index
    %8 = vector.load %arg1[%c0_9, %c0_10, %c0_11] : memref<2x8x32xf32, #tpu.memory_space<vmem>>, vector<1x8x32xf32>
    %9 = vector.shape_cast %8 : vector<1x8x32xf32> to vector<8x32xf32>
    %c0_12 = arith.constant 0 : index
    %c0_13 = arith.constant 0 : index
    %c0_14 = arith.constant 0 : index
    %10 = vector.load %arg2[%c0_12, %c0_13, %c0_14] : memref<2x8x32xf32, #tpu.memory_space<vmem>>, vector<1x8x32xf32>
    %11 = vector.shape_cast %10 : vector<1x8x32xf32> to vector<8x32xf32>
    %c0_15 = arith.constant 0 : index
    %c0_16 = arith.constant 0 : index
    %12 = vector.load %arg14[%c0_15, %c0_16] : memref<64x128xf32, #tpu.memory_space<vmem>>, vector<8x128xf32>
    %cst_17 = arith.constant dense<0.000000e+00> : vector<8x128xf32>
    %13 = tpu.matmul %9, %1, %cst_17 {dimension_numbers = #tpu.dot_dimension_numbers<[1], [0], [0], [1], [0, 0, 1, 1], [], []>} : vector<8x32xf32>, vector<32x128xf32>, vector<8x128xf32> -> vector<8x128xf32>
    %14 = arith.addf %12, %13 : vector<8x128xf32>
    %15 = arith.negf %14 : vector<8x128xf32>
    %16 = math.exp %15 : vector<8x128xf32>
    %cst_18 = arith.constant 1.000000e+00 : f32
    %17 = vector.broadcast %cst_18 : f32 to vector<8x128xf32>
    %18 = arith.addf %17, %16 : vector<8x128xf32>
    %19 = arith.divf %17, %18 : vector<8x128xf32>
    %20 = vector.extract_strided_slice %19 {offsets = [0, 0], sizes = [8, 32], strides = [1, 1]} : vector<8x128xf32> to vector<8x32xf32>
    %21 = vector.extract_strided_slice %19 {offsets = [0, 32], sizes = [8, 32], strides = [1, 1]} : vector<8x128xf32> to vector<8x32xf32>
    %22 = vector.extract_strided_slice %19 {offsets = [0, 64], sizes = [8, 32], strides = [1, 1]} : vector<8x128xf32> to vector<8x32xf32>
    %cst_19 = arith.constant 2.000000e+00 : f32
    %23 = vector.broadcast %cst_19 : f32 to vector<8x32xf32>
    %24 = arith.mulf %23, %22 : vector<8x32xf32>
    %cst_20 = arith.constant 1.000000e+00 : f32
    %25 = vector.broadcast %cst_20 : f32 to vector<8x32xf32>
    %26 = arith.subf %24, %25 : vector<8x32xf32>
    %27 = vector.extract_strided_slice %19 {offsets = [0, 96], sizes = [8, 32], strides = [1, 1]} : vector<8x128xf32> to vector<8x32xf32>
    %28 = arith.mulf %21, %11 : vector<8x32xf32>
    %29 = arith.mulf %20, %26 : vector<8x32xf32>
    %30 = arith.addf %28, %29 : vector<8x32xf32>
    %31 = math.tanh %30 : vector<8x32xf32>
    %32 = arith.mulf %27, %31 : vector<8x32xf32>
    %c0_21 = arith.constant 0 : index
    %c0_22 = arith.constant 0 : index
    %33 = vector.load %arg15[%c0_21, %c0_22] : memref<64x32xf32, #tpu.memory_space<vmem>>, vector<8x32xf32>
    tpu.vector_store %arg15[%c0_21, %c0_22], %32 {strides = array<i32>} : memref<64x32xf32, #tpu.memory_space<vmem>>, vector<8x32xf32>,
    %c8 = arith.constant 8 : index
    %c0_23 = arith.constant 0 : index
    %34 = vector.load %arg14[%c8, %c0_23] : memref<64x128xf32, #tpu.memory_space<vmem>>, vector<8x128xf32>
    %cst_24 = arith.constant dense<0.000000e+00> : vector<8x128xf32>
    %35 = tpu.matmul %32, %1, %cst_24 {dimension_numbers = #tpu.dot_dimension_numbers<[1], [0], [0], [1], [0, 0, 1, 1], [], []>} : vector<8x32xf32>, vector<32x128xf32>, vector<8x128xf32> -> vector<8x128xf32>
    %36 = arith.addf %34, %35 : vector<8x128xf32>
    %37 = arith.negf %36 : vector<8x128xf32>
    %38 = math.exp %37 : vector<8x128xf32>
    %cst_25 = arith.constant 1.000000e+00 : f32
    %39 = vector.broadcast %cst_25 : f32 to vector<8x128xf32>
    %40 = arith.addf %39, %38 : vector<8x128xf32>
    %41 = arith.divf %39, %40 : vector<8x128xf32>
    %42 = vector.extract_strided_slice %41 {offsets = [0, 0], sizes = [8, 32], strides = [1, 1]} : vector<8x128xf32> to vector<8x32xf32>
    %43 = vector.extract_strided_slice %41 {offsets = [0, 32], sizes = [8, 32], strides = [1, 1]} : vector<8x128xf32> to vector<8x32xf32>
    %44 = vector.extract_strided_slice %41 {offsets = [0, 64], sizes = [8, 32], strides = [1, 1]} : vector<8x128xf32> to vector<8x32xf32>
    %cst_26 = arith.constant 2.000000e+00 : f32
    %45 = vector.broadcast %cst_26 : f32 to vector<8x32xf32>
    %46 = arith.mulf %45, %44 : vector<8x32xf32>
    %cst_27 = arith.constant 1.000000e+00 : f32
    %47 = vector.broadcast %cst_27 : f32 to vector<8x32xf32>
    %48 = arith.subf %46, %47 : vector<8x32xf32>
    %49 = vector.extract_strided_slice %41 {offsets = [0, 96], sizes = [8, 32], strides = [1, 1]} : vector<8x128xf32> to vector<8x32xf32>
    %50 = arith.mulf %43, %30 : vector<8x32xf32>
    %51 = arith.mulf %42, %48 : vector<8x32xf32>
    %52 = arith.addf %50, %51 : vector<8x32xf32>
    %53 = math.tanh %52 : vector<8x32xf32>
    %54 = arith.mulf %49, %53 : vector<8x32xf32>
    %c8_28 = arith.constant 8 : index
    %c0_29 = arith.constant 0 : index
    %55 = vector.load %arg15[%c8_28, %c0_29] : memref<64x32xf32, #tpu.memory_space<vmem>>, vector<8x32xf32>
    tpu.vector_store %arg15[%c8_28, %c0_29], %54 {strides = array<i32>} : memref<64x32xf32, #tpu.memory_space<vmem>>, vector<8x32xf32>,
    %c16 = arith.constant 16 : index
    %c0_30 = arith.constant 0 : index
    %56 = vector.load %arg14[%c16, %c0_30] : memref<64x128xf32, #tpu.memory_space<vmem>>, vector<8x128xf32>
    %cst_31 = arith.constant dense<0.000000e+00> : vector<8x128xf32>
    %57 = tpu.matmul %54, %1, %cst_31 {dimension_numbers = #tpu.dot_dimension_numbers<[1], [0], [0], [1], [0, 0, 1, 1], [], []>} : vector<8x32xf32>, vector<32x128xf32>, vector<8x128xf32> -> vector<8x128xf32>
    %58 = arith.addf %56, %57 : vector<8x128xf32>
    %59 = arith.negf %58 : vector<8x128xf32>
    %60 = math.exp %59 : vector<8x128xf32>
    %cst_32 = arith.constant 1.000000e+00 : f32
    %61 = vector.broadcast %cst_32 : f32 to vector<8x128xf32>
    %62 = arith.addf %61, %60 : vector<8x128xf32>
    %63 = arith.divf %61, %62 : vector<8x128xf32>
    %64 = vector.extract_strided_slice %63 {offsets = [0, 0], sizes = [8, 32], strides = [1, 1]} : vector<8x128xf32> to vector<8x32xf32>
    %65 = vector.extract_strided_slice %63 {offsets = [0, 32], sizes = [8, 32], strides = [1, 1]} : vector<8x128xf32> to vector<8x32xf32>
    %66 = vector.extract_strided_slice %63 {offsets = [0, 64], sizes = [8, 32], strides = [1, 1]} : vector<8x128xf32> to vector<8x32xf32>
    %cst_33 = arith.constant 2.000000e+00 : f32
    %67 = vector.broadcast %cst_33 : f32 to vector<8x32xf32>
    %68 = arith.mulf %67, %66 : vector<8x32xf32>
    %cst_34 = arith.constant 1.000000e+00 : f32
    %69 = vector.broadcast %cst_34 : f32 to vector<8x32xf32>
    %70 = arith.subf %68, %69 : vector<8x32xf32>
    %71 = vector.extract_strided_slice %63 {offsets = [0, 96], sizes = [8, 32], strides = [1, 1]} : vector<8x128xf32> to vector<8x32xf32>
    %72 = arith.mulf %65, %52 : vector<8x32xf32>
    %73 = arith.mulf %64, %70 : vector<8x32xf32>
    %74 = arith.addf %72, %73 : vector<8x32xf32>
    %75 = math.tanh %74 : vector<8x32xf32>
    %76 = arith.mulf %71, %75 : vector<8x32xf32>
    %c16_35 = arith.constant 16 : index
    %c0_36 = arith.constant 0 : index
    %77 = vector.load %arg15[%c16_35, %c0_36] : memref<64x32xf32, #tpu.memory_space<vmem>>, vector<8x32xf32>
    tpu.vector_store %arg15[%c16_35, %c0_36], %76 {strides = array<i32>} : memref<64x32xf32, #tpu.memory_space<vmem>>, vector<8x32xf32>,
    %c24 = arith.constant 24 : index
    %c0_37 = arith.constant 0 : index
    %78 = vector.load %arg14[%c24, %c0_37] : memref<64x128xf32, #tpu.memory_space<vmem>>, vector<8x128xf32>
    %cst_38 = arith.constant dense<0.000000e+00> : vector<8x128xf32>
    %79 = tpu.matmul %76, %1, %cst_38 {dimension_numbers = #tpu.dot_dimension_numbers<[1], [0], [0], [1], [0, 0, 1, 1], [], []>} : vector<8x32xf32>, vector<32x128xf32>, vector<8x128xf32> -> vector<8x128xf32>
    %80 = arith.addf %78, %79 : vector<8x128xf32>
    %81 = arith.negf %80 : vector<8x128xf32>
    %82 = math.exp %81 : vector<8x128xf32>
    %cst_39 = arith.constant 1.000000e+00 : f32
    %83 = vector.broadcast %cst_39 : f32 to vector<8x128xf32>
    %84 = arith.addf %83, %82 : vector<8x128xf32>
    %85 = arith.divf %83, %84 : vector<8x128xf32>
    %86 = vector.extract_strided_slice %85 {offsets = [0, 0], sizes = [8, 32], strides = [1, 1]} : vector<8x128xf32> to vector<8x32xf32>
    %87 = vector.extract_strided_slice %85 {offsets = [0, 32], sizes = [8, 32], strides = [1, 1]} : vector<8x128xf32> to vector<8x32xf32>
    %88 = vector.extract_strided_slice %85 {offsets = [0, 64], sizes = [8, 32], strides = [1, 1]} : vector<8x128xf32> to vector<8x32xf32>
    %cst_40 = arith.constant 2.000000e+00 : f32
    %89 = vector.broadcast %cst_40 : f32 to vector<8x32xf32>
    %90 = arith.mulf %89, %88 : vector<8x32xf32>
    %cst_41 = arith.constant 1.000000e+00 : f32
    %91 = vector.broadcast %cst_41 : f32 to vector<8x32xf32>
    %92 = arith.subf %90, %91 : vector<8x32xf32>
    %93 = vector.extract_strided_slice %85 {offsets = [0, 96], sizes = [8, 32], strides = [1, 1]} : vector<8x128xf32> to vector<8x32xf32>
    %94 = arith.mulf %87, %74 : vector<8x32xf32>
    %95 = arith.mulf %86, %92 : vector<8x32xf32>
    %96 = arith.addf %94, %95 : vector<8x32xf32>
    %97 = math.tanh %96 : vector<8x32xf32>
    %98 = arith.mulf %93, %97 : vector<8x32xf32>
    %c24_42 = arith.constant 24 : index
    %c0_43 = arith.constant 0 : index
    %99 = vector.load %arg15[%c24_42, %c0_43] : memref<64x32xf32, #tpu.memory_space<vmem>>, vector<8x32xf32>
    tpu.vector_store %arg15[%c24_42, %c0_43], %98 {strides = array<i32>} : memref<64x32xf32, #tpu.memory_space<vmem>>, vector<8x32xf32>,
    %c32 = arith.constant 32 : index
    %c0_44 = arith.constant 0 : index
    %100 = vector.load %arg14[%c32, %c0_44] : memref<64x128xf32, #tpu.memory_space<vmem>>, vector<8x128xf32>
    %cst_45 = arith.constant dense<0.000000e+00> : vector<8x128xf32>
    %101 = tpu.matmul %98, %1, %cst_45 {dimension_numbers = #tpu.dot_dimension_numbers<[1], [0], [0], [1], [0, 0, 1, 1], [], []>} : vector<8x32xf32>, vector<32x128xf32>, vector<8x128xf32> -> vector<8x128xf32>
    %102 = arith.addf %100, %101 : vector<8x128xf32>
    %103 = arith.negf %102 : vector<8x128xf32>
    %104 = math.exp %103 : vector<8x128xf32>
    %cst_46 = arith.constant 1.000000e+00 : f32
    %105 = vector.broadcast %cst_46 : f32 to vector<8x128xf32>
    %106 = arith.addf %105, %104 : vector<8x128xf32>
    %107 = arith.divf %105, %106 : vector<8x128xf32>
    %108 = vector.extract_strided_slice %107 {offsets = [0, 0], sizes = [8, 32], strides = [1, 1]} : vector<8x128xf32> to vector<8x32xf32>
    %109 = vector.extract_strided_slice %107 {offsets = [0, 32], sizes = [8, 32], strides = [1, 1]} : vector<8x128xf32> to vector<8x32xf32>
    %110 = vector.extract_strided_slice %107 {offsets = [0, 64], sizes = [8, 32], strides = [1, 1]} : vector<8x128xf32> to vector<8x32xf32>
    %cst_47 = arith.constant 2.000000e+00 : f32
    %111 = vector.broadcast %cst_47 : f32 to vector<8x32xf32>
    %112 = arith.mulf %111, %110 : vector<8x32xf32>
    %cst_48 = arith.constant 1.000000e+00 : f32
    %113 = vector.broadcast %cst_48 : f32 to vector<8x32xf32>
    %114 = arith.subf %112, %113 : vector<8x32xf32>
    %115 = vector.extract_strided_slice %107 {offsets = [0, 96], sizes = [8, 32], strides = [1, 1]} : vector<8x128xf32> to vector<8x32xf32>
    %116 = arith.mulf %109, %96 : vector<8x32xf32>
    %117 = arith.mulf %108, %114 : vector<8x32xf32>
    %118 = arith.addf %116, %117 : vector<8x32xf32>
    %119 = math.tanh %118 : vector<8x32xf32>
    %120 = arith.mulf %115, %119 : vector<8x32xf32>
    %c32_49 = arith.constant 32 : index
    %c0_50 = arith.constant 0 : index
    %121 = vector.load %arg15[%c32_49, %c0_50] : memref<64x32xf32, #tpu.memory_space<vmem>>, vector<8x32xf32>
    tpu.vector_store %arg15[%c32_49, %c0_50], %120 {strides = array<i32>} : memref<64x32xf32, #tpu.memory_space<vmem>>, vector<8x32xf32>,
    %c40 = arith.constant 40 : index
    %c0_51 = arith.constant 0 : index
    %122 = vector.load %arg14[%c40, %c0_51] : memref<64x128xf32, #tpu.memory_space<vmem>>, vector<8x128xf32>
    %cst_52 = arith.constant dense<0.000000e+00> : vector<8x128xf32>
    %123 = tpu.matmul %120, %1, %cst_52 {dimension_numbers = #tpu.dot_dimension_numbers<[1], [0], [0], [1], [0, 0, 1, 1], [], []>} : vector<8x32xf32>, vector<32x128xf32>, vector<8x128xf32> -> vector<8x128xf32>
    %124 = arith.addf %122, %123 : vector<8x128xf32>
    %125 = arith.negf %124 : vector<8x128xf32>
    %126 = math.exp %125 : vector<8x128xf32>
    %cst_53 = arith.constant 1.000000e+00 : f32
    %127 = vector.broadcast %cst_53 : f32 to vector<8x128xf32>
    %128 = arith.addf %127, %126 : vector<8x128xf32>
    %129 = arith.divf %127, %128 : vector<8x128xf32>
    %130 = vector.extract_strided_slice %129 {offsets = [0, 0], sizes = [8, 32], strides = [1, 1]} : vector<8x128xf32> to vector<8x32xf32>
    %131 = vector.extract_strided_slice %129 {offsets = [0, 32], sizes = [8, 32], strides = [1, 1]} : vector<8x128xf32> to vector<8x32xf32>
    %132 = vector.extract_strided_slice %129 {offsets = [0, 64], sizes = [8, 32], strides = [1, 1]} : vector<8x128xf32> to vector<8x32xf32>
    %cst_54 = arith.constant 2.000000e+00 : f32
    %133 = vector.broadcast %cst_54 : f32 to vector<8x32xf32>
    %134 = arith.mulf %133, %132 : vector<8x32xf32>
    %cst_55 = arith.constant 1.000000e+00 : f32
    %135 = vector.broadcast %cst_55 : f32 to vector<8x32xf32>
    %136 = arith.subf %134, %135 : vector<8x32xf32>
    %137 = vector.extract_strided_slice %129 {offsets = [0, 96], sizes = [8, 32], strides = [1, 1]} : vector<8x128xf32> to vector<8x32xf32>
    %138 = arith.mulf %131, %118 : vector<8x32xf32>
    %139 = arith.mulf %130, %136 : vector<8x32xf32>
    %140 = arith.addf %138, %139 : vector<8x32xf32>
    %141 = math.tanh %140 : vector<8x32xf32>
    %142 = arith.mulf %137, %141 : vector<8x32xf32>
    %c40_56 = arith.constant 40 : index
    %c0_57 = arith.constant 0 : index
    %143 = vector.load %arg15[%c40_56, %c0_57] : memref<64x32xf32, #tpu.memory_space<vmem>>, vector<8x32xf32>
    tpu.vector_store %arg15[%c40_56, %c0_57], %142 {strides = array<i32>} : memref<64x32xf32, #tpu.memory_space<vmem>>, vector<8x32xf32>,
    %c48 = arith.constant 48 : index
    %c0_58 = arith.constant 0 : index
    %144 = vector.load %arg14[%c48, %c0_58] : memref<64x128xf32, #tpu.memory_space<vmem>>, vector<8x128xf32>
    %cst_59 = arith.constant dense<0.000000e+00> : vector<8x128xf32>
    %145 = tpu.matmul %142, %1, %cst_59 {dimension_numbers = #tpu.dot_dimension_numbers<[1], [0], [0], [1], [0, 0, 1, 1], [], []>} : vector<8x32xf32>, vector<32x128xf32>, vector<8x128xf32> -> vector<8x128xf32>
    %146 = arith.addf %144, %145 : vector<8x128xf32>
    %147 = arith.negf %146 : vector<8x128xf32>
    %148 = math.exp %147 : vector<8x128xf32>
    %cst_60 = arith.constant 1.000000e+00 : f32
    %149 = vector.broadcast %cst_60 : f32 to vector<8x128xf32>
    %150 = arith.addf %149, %148 : vector<8x128xf32>
    %151 = arith.divf %149, %150 : vector<8x128xf32>
    %152 = vector.extract_strided_slice %151 {offsets = [0, 0], sizes = [8, 32], strides = [1, 1]} : vector<8x128xf32> to vector<8x32xf32>
    %153 = vector.extract_strided_slice %151 {offsets = [0, 32], sizes = [8, 32], strides = [1, 1]} : vector<8x128xf32> to vector<8x32xf32>
    %154 = vector.extract_strided_slice %151 {offsets = [0, 64], sizes = [8, 32], strides = [1, 1]} : vector<8x128xf32> to vector<8x32xf32>
    %cst_61 = arith.constant 2.000000e+00 : f32
    %155 = vector.broadcast %cst_61 : f32 to vector<8x32xf32>
    %156 = arith.mulf %155, %154 : vector<8x32xf32>
    %cst_62 = arith.constant 1.000000e+00 : f32
    %157 = vector.broadcast %cst_62 : f32 to vector<8x32xf32>
    %158 = arith.subf %156, %157 : vector<8x32xf32>
    %159 = vector.extract_strided_slice %151 {offsets = [0, 96], sizes = [8, 32], strides = [1, 1]} : vector<8x128xf32> to vector<8x32xf32>
    %160 = arith.mulf %153, %140 : vector<8x32xf32>
    %161 = arith.mulf %152, %158 : vector<8x32xf32>
    %162 = arith.addf %160, %161 : vector<8x32xf32>
    %163 = math.tanh %162 : vector<8x32xf32>
    %164 = arith.mulf %159, %163 : vector<8x32xf32>
    %c48_63 = arith.constant 48 : index
    %c0_64 = arith.constant 0 : index
    %165 = vector.load %arg15[%c48_63, %c0_64] : memref<64x32xf32, #tpu.memory_space<vmem>>, vector<8x32xf32>
    tpu.vector_store %arg15[%c48_63, %c0_64], %164 {strides = array<i32>} : memref<64x32xf32, #tpu.memory_space<vmem>>, vector<8x32xf32>,
    %c56 = arith.constant 56 : index
    %c0_65 = arith.constant 0 : index
    %166 = vector.load %arg14[%c56, %c0_65] : memref<64x128xf32, #tpu.memory_space<vmem>>, vector<8x128xf32>
    %cst_66 = arith.constant dense<0.000000e+00> : vector<8x128xf32>
    %167 = tpu.matmul %164, %1, %cst_66 {dimension_numbers = #tpu.dot_dimension_numbers<[1], [0], [0], [1], [0, 0, 1, 1], [], []>} : vector<8x32xf32>, vector<32x128xf32>, vector<8x128xf32> -> vector<8x128xf32>
    %168 = arith.addf %166, %167 : vector<8x128xf32>
    %169 = arith.negf %168 : vector<8x128xf32>
    %170 = math.exp %169 : vector<8x128xf32>
    %cst_67 = arith.constant 1.000000e+00 : f32
    %171 = vector.broadcast %cst_67 : f32 to vector<8x128xf32>
    %172 = arith.addf %171, %170 : vector<8x128xf32>
    %173 = arith.divf %171, %172 : vector<8x128xf32>
    %174 = vector.extract_strided_slice %173 {offsets = [0, 0], sizes = [8, 32], strides = [1, 1]} : vector<8x128xf32> to vector<8x32xf32>
    %175 = vector.extract_strided_slice %173 {offsets = [0, 32], sizes = [8, 32], strides = [1, 1]} : vector<8x128xf32> to vector<8x32xf32>
    %176 = vector.extract_strided_slice %173 {offsets = [0, 64], sizes = [8, 32], strides = [1, 1]} : vector<8x128xf32> to vector<8x32xf32>
    %cst_68 = arith.constant 2.000000e+00 : f32
    %177 = vector.broadcast %cst_68 : f32 to vector<8x32xf32>
    %178 = arith.mulf %177, %176 : vector<8x32xf32>
    %cst_69 = arith.constant 1.000000e+00 : f32
    %179 = vector.broadcast %cst_69 : f32 to vector<8x32xf32>
    %180 = arith.subf %178, %179 : vector<8x32xf32>
    %181 = vector.extract_strided_slice %173 {offsets = [0, 96], sizes = [8, 32], strides = [1, 1]} : vector<8x128xf32> to vector<8x32xf32>
    %182 = arith.mulf %175, %162 : vector<8x32xf32>
    %183 = arith.mulf %174, %180 : vector<8x32xf32>
    %184 = arith.addf %182, %183 : vector<8x32xf32>
    %185 = math.tanh %184 : vector<8x32xf32>
    %186 = arith.mulf %181, %185 : vector<8x32xf32>
    %c56_70 = arith.constant 56 : index
    %c0_71 = arith.constant 0 : index
    %187 = vector.load %arg15[%c56_70, %c0_71] : memref<64x32xf32, #tpu.memory_space<vmem>>, vector<8x32xf32>
    tpu.vector_store %arg15[%c56_70, %c0_71], %186 {strides = array<i32>} : memref<64x32xf32, #tpu.memory_space<vmem>>, vector<8x32xf32>,
    %c0_72 = arith.constant 0 : index
    %c0_73 = arith.constant 0 : index
    %c0_74 = arith.constant 0 : index
    %188 = vector.load %arg12[%c0_72, %c0_73, %c0_74] : memref<2x8x32xf32, #tpu.memory_space<vmem>>, vector<1x8x32xf32>
    %189 = vector.shape_cast %188 : vector<1x8x32xf32> to vector<8x32xf32>
    %190 = vector.shape_cast %186 : vector<8x32xf32> to vector<1x8x32xf32>
    tpu.vector_store %arg12[%c0_72, %c0_73, %c0_74], %190 {strides = array<i32>} : memref<2x8x32xf32, #tpu.memory_space<vmem>>, vector<1x8x32xf32>,
    %c0_75 = arith.constant 0 : index
    %c0_76 = arith.constant 0 : index
    %c0_77 = arith.constant 0 : index
    %191 = vector.load %arg13[%c0_75, %c0_76, %c0_77] : memref<2x8x32xf32, #tpu.memory_space<vmem>>, vector<1x8x32xf32>
    %192 = vector.shape_cast %191 : vector<1x8x32xf32> to vector<8x32xf32>
    %193 = vector.shape_cast %184 : vector<8x32xf32> to vector<1x8x32xf32>
    tpu.vector_store %arg13[%c0_75, %c0_76, %c0_77], %193 {strides = array<i32>} : memref<2x8x32xf32, #tpu.memory_space<vmem>>, vector<1x8x32xf32>,
    %c0_78 = arith.constant 0 : index
    %c0_79 = arith.constant 0 : index
    %194 = vector.load %arg6[%c0_78, %c0_79] : memref<32x128xf32, #tpu.memory_space<vmem>>, vector<32x128xf32>
    %c0_80 = arith.constant 0 : index
    %c0_81 = arith.constant 0 : index
    %195 = vector.load %arg7[%c0_80, %c0_81] : memref<32x128xf32, #tpu.memory_space<vmem>>, vector<32x128xf32>
    %c0_82 = arith.constant 0 : index
    %c0_83 = arith.constant 0 : index
    %196 = vector.load %arg8[%c0_82, %c0_83] : memref<1x128xf32, #tpu.memory_space<vmem>>, vector<1x128xf32>
    %c0_84 = arith.constant 0 : index
    %c0_85 = arith.constant 0 : index
    %197 = vector.load %arg15[%c0_84, %c0_85] : memref<64x32xf32, #tpu.memory_space<vmem>>, vector<64x32xf32>
    %cst_86 = arith.constant dense<0.000000e+00> : vector<64x128xf32>
    %198 = tpu.matmul %197, %194, %cst_86 {dimension_numbers = #tpu.dot_dimension_numbers<[1], [0], [0], [1], [0, 0, 1, 1], [], []>} : vector<64x32xf32>, vector<32x128xf32>, vector<64x128xf32> -> vector<64x128xf32>
    %199 = vector.broadcast %196 : vector<1x128xf32> to vector<64x128xf32>
    %200 = arith.addf %198, %199 : vector<64x128xf32>
    %c0_87 = arith.constant 0 : index
    %c0_88 = arith.constant 0 : index
    %201 = vector.load %arg14[%c0_87, %c0_88] : memref<64x128xf32, #tpu.memory_space<vmem>>, vector<64x128xf32>
    tpu.vector_store %arg14[%c0_87, %c0_88], %200 {strides = array<i32>} : memref<64x128xf32, #tpu.memory_space<vmem>>, vector<64x128xf32>,
    %c1 = arith.constant 1 : index
    %c0_89 = arith.constant 0 : index
    %c0_90 = arith.constant 0 : index
    %202 = vector.load %arg1[%c1, %c0_89, %c0_90] : memref<2x8x32xf32, #tpu.memory_space<vmem>>, vector<1x8x32xf32>
    %203 = vector.shape_cast %202 : vector<1x8x32xf32> to vector<8x32xf32>
    %c1_91 = arith.constant 1 : index
    %c0_92 = arith.constant 0 : index
    %c0_93 = arith.constant 0 : index
    %204 = vector.load %arg2[%c1_91, %c0_92, %c0_93] : memref<2x8x32xf32, #tpu.memory_space<vmem>>, vector<1x8x32xf32>
    %205 = vector.shape_cast %204 : vector<1x8x32xf32> to vector<8x32xf32>
    %c0_94 = arith.constant 0 : index
    %c0_95 = arith.constant 0 : index
    %206 = vector.load %arg14[%c0_94, %c0_95] : memref<64x128xf32, #tpu.memory_space<vmem>>, vector<8x128xf32>
    %cst_96 = arith.constant dense<0.000000e+00> : vector<8x128xf32>
    %207 = tpu.matmul %203, %195, %cst_96 {dimension_numbers = #tpu.dot_dimension_numbers<[1], [0], [0], [1], [0, 0, 1, 1], [], []>} : vector<8x32xf32>, vector<32x128xf32>, vector<8x128xf32> -> vector<8x128xf32>
    %208 = arith.addf %206, %207 : vector<8x128xf32>
    %209 = arith.negf %208 : vector<8x128xf32>
    %210 = math.exp %209 : vector<8x128xf32>
    %cst_97 = arith.constant 1.000000e+00 : f32
    %211 = vector.broadcast %cst_97 : f32 to vector<8x128xf32>
    %212 = arith.addf %211, %210 : vector<8x128xf32>
    %213 = arith.divf %211, %212 : vector<8x128xf32>
    %214 = vector.extract_strided_slice %213 {offsets = [0, 0], sizes = [8, 32], strides = [1, 1]} : vector<8x128xf32> to vector<8x32xf32>
    %215 = vector.extract_strided_slice %213 {offsets = [0, 32], sizes = [8, 32], strides = [1, 1]} : vector<8x128xf32> to vector<8x32xf32>
    %216 = vector.extract_strided_slice %213 {offsets = [0, 64], sizes = [8, 32], strides = [1, 1]} : vector<8x128xf32> to vector<8x32xf32>
    %cst_98 = arith.constant 2.000000e+00 : f32
    %217 = vector.broadcast %cst_98 : f32 to vector<8x32xf32>
    %218 = arith.mulf %217, %216 : vector<8x32xf32>
    %cst_99 = arith.constant 1.000000e+00 : f32
    %219 = vector.broadcast %cst_99 : f32 to vector<8x32xf32>
    %220 = arith.subf %218, %219 : vector<8x32xf32>
    %221 = vector.extract_strided_slice %213 {offsets = [0, 96], sizes = [8, 32], strides = [1, 1]} : vector<8x128xf32> to vector<8x32xf32>
    %222 = arith.mulf %215, %205 : vector<8x32xf32>
    %223 = arith.mulf %214, %220 : vector<8x32xf32>
    %224 = arith.addf %222, %223 : vector<8x32xf32>
    %225 = math.tanh %224 : vector<8x32xf32>
    %226 = arith.mulf %221, %225 : vector<8x32xf32>
    %c8_100 = arith.constant 8 : index
    %c0_101 = arith.constant 0 : index
    %227 = vector.load %arg14[%c8_100, %c0_101] : memref<64x128xf32, #tpu.memory_space<vmem>>, vector<8x128xf32>
    %cst_102 = arith.constant dense<0.000000e+00> : vector<8x128xf32>
    %228 = tpu.matmul %226, %195, %cst_102 {dimension_numbers = #tpu.dot_dimension_numbers<[1], [0], [0], [1], [0, 0, 1, 1], [], []>} : vector<8x32xf32>, vector<32x128xf32>, vector<8x128xf32> -> vector<8x128xf32>
    %229 = arith.addf %227, %228 : vector<8x128xf32>
    %230 = arith.negf %229 : vector<8x128xf32>
    %231 = math.exp %230 : vector<8x128xf32>
    %cst_103 = arith.constant 1.000000e+00 : f32
    %232 = vector.broadcast %cst_103 : f32 to vector<8x128xf32>
    %233 = arith.addf %232, %231 : vector<8x128xf32>
    %234 = arith.divf %232, %233 : vector<8x128xf32>
    %235 = vector.extract_strided_slice %234 {offsets = [0, 0], sizes = [8, 32], strides = [1, 1]} : vector<8x128xf32> to vector<8x32xf32>
    %236 = vector.extract_strided_slice %234 {offsets = [0, 32], sizes = [8, 32], strides = [1, 1]} : vector<8x128xf32> to vector<8x32xf32>
    %237 = vector.extract_strided_slice %234 {offsets = [0, 64], sizes = [8, 32], strides = [1, 1]} : vector<8x128xf32> to vector<8x32xf32>
    %cst_104 = arith.constant 2.000000e+00 : f32
    %238 = vector.broadcast %cst_104 : f32 to vector<8x32xf32>
    %239 = arith.mulf %238, %237 : vector<8x32xf32>
    %cst_105 = arith.constant 1.000000e+00 : f32
    %240 = vector.broadcast %cst_105 : f32 to vector<8x32xf32>
    %241 = arith.subf %239, %240 : vector<8x32xf32>
    %242 = vector.extract_strided_slice %234 {offsets = [0, 96], sizes = [8, 32], strides = [1, 1]} : vector<8x128xf32> to vector<8x32xf32>
    %243 = arith.mulf %236, %224 : vector<8x32xf32>
    %244 = arith.mulf %235, %241 : vector<8x32xf32>
    %245 = arith.addf %243, %244 : vector<8x32xf32>
    %246 = math.tanh %245 : vector<8x32xf32>
    %247 = arith.mulf %242, %246 : vector<8x32xf32>
    %c16_106 = arith.constant 16 : index
    %c0_107 = arith.constant 0 : index
    %248 = vector.load %arg14[%c16_106, %c0_107] : memref<64x128xf32, #tpu.memory_space<vmem>>, vector<8x128xf32>
    %cst_108 = arith.constant dense<0.000000e+00> : vector<8x128xf32>
    %249 = tpu.matmul %247, %195, %cst_108 {dimension_numbers = #tpu.dot_dimension_numbers<[1], [0], [0], [1], [0, 0, 1, 1], [], []>} : vector<8x32xf32>, vector<32x128xf32>, vector<8x128xf32> -> vector<8x128xf32>
    %250 = arith.addf %248, %249 : vector<8x128xf32>
    %251 = arith.negf %250 : vector<8x128xf32>
    %252 = math.exp %251 : vector<8x128xf32>
    %cst_109 = arith.constant 1.000000e+00 : f32
    %253 = vector.broadcast %cst_109 : f32 to vector<8x128xf32>
    %254 = arith.addf %253, %252 : vector<8x128xf32>
    %255 = arith.divf %253, %254 : vector<8x128xf32>
    %256 = vector.extract_strided_slice %255 {offsets = [0, 0], sizes = [8, 32], strides = [1, 1]} : vector<8x128xf32> to vector<8x32xf32>
    %257 = vector.extract_strided_slice %255 {offsets = [0, 32], sizes = [8, 32], strides = [1, 1]} : vector<8x128xf32> to vector<8x32xf32>
    %258 = vector.extract_strided_slice %255 {offsets = [0, 64], sizes = [8, 32], strides = [1, 1]} : vector<8x128xf32> to vector<8x32xf32>
    %cst_110 = arith.constant 2.000000e+00 : f32
    %259 = vector.broadcast %cst_110 : f32 to vector<8x32xf32>
    %260 = arith.mulf %259, %258 : vector<8x32xf32>
    %cst_111 = arith.constant 1.000000e+00 : f32
    %261 = vector.broadcast %cst_111 : f32 to vector<8x32xf32>
    %262 = arith.subf %260, %261 : vector<8x32xf32>
    %263 = vector.extract_strided_slice %255 {offsets = [0, 96], sizes = [8, 32], strides = [1, 1]} : vector<8x128xf32> to vector<8x32xf32>
    %264 = arith.mulf %257, %245 : vector<8x32xf32>
    %265 = arith.mulf %256, %262 : vector<8x32xf32>
    %266 = arith.addf %264, %265 : vector<8x32xf32>
    %267 = math.tanh %266 : vector<8x32xf32>
    %268 = arith.mulf %263, %267 : vector<8x32xf32>
    %c24_112 = arith.constant 24 : index
    %c0_113 = arith.constant 0 : index
    %269 = vector.load %arg14[%c24_112, %c0_113] : memref<64x128xf32, #tpu.memory_space<vmem>>, vector<8x128xf32>
    %cst_114 = arith.constant dense<0.000000e+00> : vector<8x128xf32>
    %270 = tpu.matmul %268, %195, %cst_114 {dimension_numbers = #tpu.dot_dimension_numbers<[1], [0], [0], [1], [0, 0, 1, 1], [], []>} : vector<8x32xf32>, vector<32x128xf32>, vector<8x128xf32> -> vector<8x128xf32>
    %271 = arith.addf %269, %270 : vector<8x128xf32>
    %272 = arith.negf %271 : vector<8x128xf32>
    %273 = math.exp %272 : vector<8x128xf32>
    %cst_115 = arith.constant 1.000000e+00 : f32
    %274 = vector.broadcast %cst_115 : f32 to vector<8x128xf32>
    %275 = arith.addf %274, %273 : vector<8x128xf32>
    %276 = arith.divf %274, %275 : vector<8x128xf32>
    %277 = vector.extract_strided_slice %276 {offsets = [0, 0], sizes = [8, 32], strides = [1, 1]} : vector<8x128xf32> to vector<8x32xf32>
    %278 = vector.extract_strided_slice %276 {offsets = [0, 32], sizes = [8, 32], strides = [1, 1]} : vector<8x128xf32> to vector<8x32xf32>
    %279 = vector.extract_strided_slice %276 {offsets = [0, 64], sizes = [8, 32], strides = [1, 1]} : vector<8x128xf32> to vector<8x32xf32>
    %cst_116 = arith.constant 2.000000e+00 : f32
    %280 = vector.broadcast %cst_116 : f32 to vector<8x32xf32>
    %281 = arith.mulf %280, %279 : vector<8x32xf32>
    %cst_117 = arith.constant 1.000000e+00 : f32
    %282 = vector.broadcast %cst_117 : f32 to vector<8x32xf32>
    %283 = arith.subf %281, %282 : vector<8x32xf32>
    %284 = vector.extract_strided_slice %276 {offsets = [0, 96], sizes = [8, 32], strides = [1, 1]} : vector<8x128xf32> to vector<8x32xf32>
    %285 = arith.mulf %278, %266 : vector<8x32xf32>
    %286 = arith.mulf %277, %283 : vector<8x32xf32>
    %287 = arith.addf %285, %286 : vector<8x32xf32>
    %288 = math.tanh %287 : vector<8x32xf32>
    %289 = arith.mulf %284, %288 : vector<8x32xf32>
    %c32_118 = arith.constant 32 : index
    %c0_119 = arith.constant 0 : index
    %290 = vector.load %arg14[%c32_118, %c0_119] : memref<64x128xf32, #tpu.memory_space<vmem>>, vector<8x128xf32>
    %cst_120 = arith.constant dense<0.000000e+00> : vector<8x128xf32>
    %291 = tpu.matmul %289, %195, %cst_120 {dimension_numbers = #tpu.dot_dimension_numbers<[1], [0], [0], [1], [0, 0, 1, 1], [], []>} : vector<8x32xf32>, vector<32x128xf32>, vector<8x128xf32> -> vector<8x128xf32>
    %292 = arith.addf %290, %291 : vector<8x128xf32>
    %293 = arith.negf %292 : vector<8x128xf32>
    %294 = math.exp %293 : vector<8x128xf32>
    %cst_121 = arith.constant 1.000000e+00 : f32
    %295 = vector.broadcast %cst_121 : f32 to vector<8x128xf32>
    %296 = arith.addf %295, %294 : vector<8x128xf32>
    %297 = arith.divf %295, %296 : vector<8x128xf32>
    %298 = vector.extract_strided_slice %297 {offsets = [0, 0], sizes = [8, 32], strides = [1, 1]} : vector<8x128xf32> to vector<8x32xf32>
    %299 = vector.extract_strided_slice %297 {offsets = [0, 32], sizes = [8, 32], strides = [1, 1]} : vector<8x128xf32> to vector<8x32xf32>
    %300 = vector.extract_strided_slice %297 {offsets = [0, 64], sizes = [8, 32], strides = [1, 1]} : vector<8x128xf32> to vector<8x32xf32>
    %cst_122 = arith.constant 2.000000e+00 : f32
    %301 = vector.broadcast %cst_122 : f32 to vector<8x32xf32>
    %302 = arith.mulf %301, %300 : vector<8x32xf32>
    %cst_123 = arith.constant 1.000000e+00 : f32
    %303 = vector.broadcast %cst_123 : f32 to vector<8x32xf32>
    %304 = arith.subf %302, %303 : vector<8x32xf32>
    %305 = vector.extract_strided_slice %297 {offsets = [0, 96], sizes = [8, 32], strides = [1, 1]} : vector<8x128xf32> to vector<8x32xf32>
    %306 = arith.mulf %299, %287 : vector<8x32xf32>
    %307 = arith.mulf %298, %304 : vector<8x32xf32>
    %308 = arith.addf %306, %307 : vector<8x32xf32>
    %309 = math.tanh %308 : vector<8x32xf32>
    %310 = arith.mulf %305, %309 : vector<8x32xf32>
    %c40_124 = arith.constant 40 : index
    %c0_125 = arith.constant 0 : index
    %311 = vector.load %arg14[%c40_124, %c0_125] : memref<64x128xf32, #tpu.memory_space<vmem>>, vector<8x128xf32>
    %cst_126 = arith.constant dense<0.000000e+00> : vector<8x128xf32>
    %312 = tpu.matmul %310, %195, %cst_126 {dimension_numbers = #tpu.dot_dimension_numbers<[1], [0], [0], [1], [0, 0, 1, 1], [], []>} : vector<8x32xf32>, vector<32x128xf32>, vector<8x128xf32> -> vector<8x128xf32>
    %313 = arith.addf %311, %312 : vector<8x128xf32>
    %314 = arith.negf %313 : vector<8x128xf32>
    %315 = math.exp %314 : vector<8x128xf32>
    %cst_127 = arith.constant 1.000000e+00 : f32
    %316 = vector.broadcast %cst_127 : f32 to vector<8x128xf32>
    %317 = arith.addf %316, %315 : vector<8x128xf32>
    %318 = arith.divf %316, %317 : vector<8x128xf32>
    %319 = vector.extract_strided_slice %318 {offsets = [0, 0], sizes = [8, 32], strides = [1, 1]} : vector<8x128xf32> to vector<8x32xf32>
    %320 = vector.extract_strided_slice %318 {offsets = [0, 32], sizes = [8, 32], strides = [1, 1]} : vector<8x128xf32> to vector<8x32xf32>
    %321 = vector.extract_strided_slice %318 {offsets = [0, 64], sizes = [8, 32], strides = [1, 1]} : vector<8x128xf32> to vector<8x32xf32>
    %cst_128 = arith.constant 2.000000e+00 : f32
    %322 = vector.broadcast %cst_128 : f32 to vector<8x32xf32>
    %323 = arith.mulf %322, %321 : vector<8x32xf32>
    %cst_129 = arith.constant 1.000000e+00 : f32
    %324 = vector.broadcast %cst_129 : f32 to vector<8x32xf32>
    %325 = arith.subf %323, %324 : vector<8x32xf32>
    %326 = vector.extract_strided_slice %318 {offsets = [0, 96], sizes = [8, 32], strides = [1, 1]} : vector<8x128xf32> to vector<8x32xf32>
    %327 = arith.mulf %320, %308 : vector<8x32xf32>
    %328 = arith.mulf %319, %325 : vector<8x32xf32>
    %329 = arith.addf %327, %328 : vector<8x32xf32>
    %330 = math.tanh %329 : vector<8x32xf32>
    %331 = arith.mulf %326, %330 : vector<8x32xf32>
    %c48_130 = arith.constant 48 : index
    %c0_131 = arith.constant 0 : index
    %332 = vector.load %arg14[%c48_130, %c0_131] : memref<64x128xf32, #tpu.memory_space<vmem>>, vector<8x128xf32>
    %cst_132 = arith.constant dense<0.000000e+00> : vector<8x128xf32>
    %333 = tpu.matmul %331, %195, %cst_132 {dimension_numbers = #tpu.dot_dimension_numbers<[1], [0], [0], [1], [0, 0, 1, 1], [], []>} : vector<8x32xf32>, vector<32x128xf32>, vector<8x128xf32> -> vector<8x128xf32>
    %334 = arith.addf %332, %333 : vector<8x128xf32>
    %335 = arith.negf %334 : vector<8x128xf32>
    %336 = math.exp %335 : vector<8x128xf32>
    %cst_133 = arith.constant 1.000000e+00 : f32
    %337 = vector.broadcast %cst_133 : f32 to vector<8x128xf32>
    %338 = arith.addf %337, %336 : vector<8x128xf32>
    %339 = arith.divf %337, %338 : vector<8x128xf32>
    %340 = vector.extract_strided_slice %339 {offsets = [0, 0], sizes = [8, 32], strides = [1, 1]} : vector<8x128xf32> to vector<8x32xf32>
    %341 = vector.extract_strided_slice %339 {offsets = [0, 32], sizes = [8, 32], strides = [1, 1]} : vector<8x128xf32> to vector<8x32xf32>
    %342 = vector.extract_strided_slice %339 {offsets = [0, 64], sizes = [8, 32], strides = [1, 1]} : vector<8x128xf32> to vector<8x32xf32>
    %cst_134 = arith.constant 2.000000e+00 : f32
    %343 = vector.broadcast %cst_134 : f32 to vector<8x32xf32>
    %344 = arith.mulf %343, %342 : vector<8x32xf32>
    %cst_135 = arith.constant 1.000000e+00 : f32
    %345 = vector.broadcast %cst_135 : f32 to vector<8x32xf32>
    %346 = arith.subf %344, %345 : vector<8x32xf32>
    %347 = vector.extract_strided_slice %339 {offsets = [0, 96], sizes = [8, 32], strides = [1, 1]} : vector<8x128xf32> to vector<8x32xf32>
    %348 = arith.mulf %341, %329 : vector<8x32xf32>
    %349 = arith.mulf %340, %346 : vector<8x32xf32>
    %350 = arith.addf %348, %349 : vector<8x32xf32>
    %351 = math.tanh %350 : vector<8x32xf32>
    %352 = arith.mulf %347, %351 : vector<8x32xf32>
    %c56_136 = arith.constant 56 : index
    %c0_137 = arith.constant 0 : index
    %353 = vector.load %arg14[%c56_136, %c0_137] : memref<64x128xf32, #tpu.memory_space<vmem>>, vector<8x128xf32>
    %cst_138 = arith.constant dense<0.000000e+00> : vector<8x128xf32>
    %354 = tpu.matmul %352, %195, %cst_138 {dimension_numbers = #tpu.dot_dimension_numbers<[1], [0], [0], [1], [0, 0, 1, 1], [], []>} : vector<8x32xf32>, vector<32x128xf32>, vector<8x128xf32> -> vector<8x128xf32>
    %355 = arith.addf %353, %354 : vector<8x128xf32>
    %356 = arith.negf %355 : vector<8x128xf32>
    %357 = math.exp %356 : vector<8x128xf32>
    %cst_139 = arith.constant 1.000000e+00 : f32
    %358 = vector.broadcast %cst_139 : f32 to vector<8x128xf32>
    %359 = arith.addf %358, %357 : vector<8x128xf32>
    %360 = arith.divf %358, %359 : vector<8x128xf32>
    %361 = vector.extract_strided_slice %360 {offsets = [0, 0], sizes = [8, 32], strides = [1, 1]} : vector<8x128xf32> to vector<8x32xf32>
    %362 = vector.extract_strided_slice %360 {offsets = [0, 32], sizes = [8, 32], strides = [1, 1]} : vector<8x128xf32> to vector<8x32xf32>
    %363 = vector.extract_strided_slice %360 {offsets = [0, 64], sizes = [8, 32], strides = [1, 1]} : vector<8x128xf32> to vector<8x32xf32>
    %cst_140 = arith.constant 2.000000e+00 : f32
    %364 = vector.broadcast %cst_140 : f32 to vector<8x32xf32>
    %365 = arith.mulf %364, %363 : vector<8x32xf32>
    %cst_141 = arith.constant 1.000000e+00 : f32
    %366 = vector.broadcast %cst_141 : f32 to vector<8x32xf32>
    %367 = arith.subf %365, %366 : vector<8x32xf32>
    %368 = vector.extract_strided_slice %360 {offsets = [0, 96], sizes = [8, 32], strides = [1, 1]} : vector<8x128xf32> to vector<8x32xf32>
    %369 = arith.mulf %362, %350 : vector<8x32xf32>
    %370 = arith.mulf %361, %367 : vector<8x32xf32>
    %371 = arith.addf %369, %370 : vector<8x32xf32>
    %372 = math.tanh %371 : vector<8x32xf32>
    %373 = arith.mulf %368, %372 : vector<8x32xf32>
    %c1_142 = arith.constant 1 : index
    %c0_143 = arith.constant 0 : index
    %c0_144 = arith.constant 0 : index
    %374 = vector.load %arg12[%c1_142, %c0_143, %c0_144] : memref<2x8x32xf32, #tpu.memory_space<vmem>>, vector<1x8x32xf32>
    %375 = vector.shape_cast %374 : vector<1x8x32xf32> to vector<8x32xf32>
    %376 = vector.shape_cast %373 : vector<8x32xf32> to vector<1x8x32xf32>
    tpu.vector_store %arg12[%c1_142, %c0_143, %c0_144], %376 {strides = array<i32>} : memref<2x8x32xf32, #tpu.memory_space<vmem>>, vector<1x8x32xf32>,
    %c1_145 = arith.constant 1 : index
    %c0_146 = arith.constant 0 : index
    %c0_147 = arith.constant 0 : index
    %377 = vector.load %arg13[%c1_145, %c0_146, %c0_147] : memref<2x8x32xf32, #tpu.memory_space<vmem>>, vector<1x8x32xf32>
    %378 = vector.shape_cast %377 : vector<1x8x32xf32> to vector<8x32xf32>
    %379 = vector.shape_cast %371 : vector<8x32xf32> to vector<1x8x32xf32>
    tpu.vector_store %arg13[%c1_145, %c0_146, %c0_147], %379 {strides = array<i32>} : memref<2x8x32xf32, #tpu.memory_space<vmem>>, vector<1x8x32xf32>,
    %c0_148 = arith.constant 0 : index
    %c0_149 = arith.constant 0 : index
    %380 = vector.load %arg9[%c0_148, %c0_149] : memref<32x5xf32, #tpu.memory_space<vmem>>, vector<32x5xf32>
    %cst_150 = arith.constant dense<0.000000e+00> : vector<8x5xf32>
    %381 = tpu.matmul %373, %380, %cst_150 {dimension_numbers = #tpu.dot_dimension_numbers<[1], [0], [0], [1], [0, 0, 1, 1], [], []>} : vector<8x32xf32>, vector<32x5xf32>, vector<8x5xf32> -> vector<8x5xf32>
    %c0_151 = arith.constant 0 : index
    %c0_152 = arith.constant 0 : index
    %382 = vector.load %arg10[%c0_151, %c0_152] : memref<1x5xf32, #tpu.memory_space<vmem>>, vector<1x5xf32>
    %383 = vector.broadcast %382 : vector<1x5xf32> to vector<8x5xf32>
    %384 = arith.addf %381, %383 : vector<8x5xf32>
    %cst_153 = arith.constant dense<0xFF800000> : vector<8xf32>
    %385 = vector.multi_reduction <maximumf>, %384, %cst_153 [1] : vector<8x5xf32> to vector<8xf32>
    %386 = vector.shape_cast %385 : vector<8xf32> to vector<8x1xf32>
    %387 = vector.broadcast %386 : vector<8x1xf32> to vector<8x5xf32>
    %388 = arith.subf %384, %387 : vector<8x5xf32>
    %389 = math.exp %388 : vector<8x5xf32>
    %cst_154 = arith.constant dense<0.000000e+00> : vector<8xf32>
    %390 = vector.multi_reduction <add>, %389, %cst_154 [1] : vector<8x5xf32> to vector<8xf32>
    %391 = vector.shape_cast %390 : vector<8xf32> to vector<8x1xf32>
    %392 = math.log %391 : vector<8x1xf32>
    %393 = vector.broadcast %392 : vector<8x1xf32> to vector<8x5xf32>
    %394 = arith.subf %388, %393 : vector<8x5xf32>
    %c0_155 = arith.constant 0 : index
    %c0_156 = arith.constant 0 : index
    %395 = vector.load %arg11[%c0_155, %c0_156] : memref<8x5xf32, #tpu.memory_space<vmem>>, vector<8x5xf32>
    tpu.vector_store %arg11[%c0_155, %c0_156], %394 {strides = array<i32>} : memref<8x5xf32, #tpu.memory_space<vmem>>, vector<8x5xf32>,
    return
  }
}

</mosaic_0001>

<llo_original>
// kernel: tpu_custom_call.1
$region0: #{tpu_custom_call.1}
  #allocation0 [shape = 'u32[]', space=smem, size = 0x4, offset = 0x4, fixed_abs, tag = 'smem constant byte address 0x4 - core index']
  #allocation1 [shape = 'u32[72,128]{1,0:T(1,128)}', space=vmem, size = 0x9000, scoped, tag = 'internal scratch']
  #allocation2 [shape = 'f32[64,128]{1,0:T(8,128)}', space=vmem, size = 0x8000, scoped, tag = 'scratch operand']
  #allocation3 [shape = 'f32[64,32]{1,0:T(8,128)}', space=vmem, size = 0x8000, scoped, tag = 'scratch operand']
  %s0 = inlined_call_operand.vmem [shape: f32[64,32], index: 0, kind: input, shape index: {}]
  %s1 = inlined_call_operand.hbm [shape: f32[2,8,32], index: 1, kind: input, shape index: {}]
  %s2 = inlined_call_operand.hbm [shape: f32[2,8,32], index: 2, kind: input, shape index: {}]
  %s3 = inlined_call_operand.vmem [shape: f32[32,128], index: 3, kind: input, shape index: {}]
  %s4 = inlined_call_operand.vmem [shape: f32[32,128], index: 4, kind: input, shape index: {}]
  %s5 = inlined_call_operand.vmem [shape: f32[1,128], index: 5, kind: input, shape index: {}]
  %s6 = inlined_call_operand.vmem [shape: f32[32,128], index: 6, kind: input, shape index: {}]
  %s7 = inlined_call_operand.vmem [shape: f32[32,128], index: 7, kind: input, shape index: {}]
  %s8 = inlined_call_operand.vmem [shape: f32[1,128], index: 8, kind: input, shape index: {}]
  %s9 = inlined_call_operand.vmem [shape: f32[32,5], index: 9, kind: input, shape index: {}]
  %s10 = inlined_call_operand.vmem [shape: f32[1,5], index: 10, kind: input, shape index: {}]
  %s11 = inlined_call_operand.hbm [shape: f32[8,5], index: 11, kind: output, shape index: {0}]
  %s12 = inlined_call_operand.hbm [shape: f32[2,8,32], index: 12, kind: output, shape index: {1}]
  %s13 = inlined_call_operand.hbm [shape: f32[2,8,32], index: 13, kind: output, shape index: {2}]
  %14 = xla_tuple %s11, %s12, %s13
  %s15 = sld [smem:[#allocation0]]
  $region78: #{tpu_custom_call.1} parent=0
    _
  %s17 = ssub.s32 1, %s15
  %s18 = scalar_select 0, %s17, %s15
  $region1: #{tpu_custom_call.1} parent=0
    #allocation4 [shape = 'u8[8192]{0}', space=vmem, size = 0x2000, scoped, tag = 'input window, operand 1, single buffered']
    #allocation5 [shape = 's32[1]{0}', space=sflag, size = 0x4, scoped, tag = 'scoped memory for tpu_custom_call.1']
    #allocation6 [shape = 's32[1]{0}', space=sflag, size = 0x4, scoped, tag = 'scoped memory for tpu_custom_call.1']
    #allocation7 [shape = 'u8[8192]{0}', space=vmem, size = 0x2000, scoped, tag = 'input window, operand 2, single buffered']
    #allocation8 [shape = 's32[1]{0}', space=sflag, size = 0x4, scoped, tag = 'scoped memory for tpu_custom_call.1']
    #allocation9 [shape = 'u8[4096]{0}', space=vmem, size = 0x1000, scoped, tag = 'output window, operand 0, single buffered']
    #allocation10 [shape = 'u8[8192]{0}', space=vmem, size = 0x2000, scoped, tag = 'output window, operand 1, single buffered']
    #allocation11 [shape = 's32[1]{0}', space=sflag, size = 0x4, scoped, tag = 'scoped memory for tpu_custom_call.1']
    #allocation12 [shape = 'u8[8192]{0}', space=vmem, size = 0x2000, scoped, tag = 'output window, operand 2, single buffered']
    %19 = vsyncpa [#allocation5], 0
    %20 = vsyncpa [#allocation8], 0
    %21 = vsyncpa [#allocation6], 0
    %22 = vsyncpa [#allocation11], 0
    // Predicated region
    $region2: #{tpu_custom_call.1} parent=1 // pred_check
      _
    $region3: #{tpu_custom_call.1} parent=1 // pred_check_branch
      %24 = sbr.rel (0) target = $region5
    $region4: #{tpu_custom_call.1} parent=1 // pred_region
      _
    $region5: #{tpu_custom_call.1} parent=1 // pred_fallthru
      _
    // Predicated region
    $region6: #{tpu_custom_call.1} parent=1 // pred_check
      _
    $region7: #{tpu_custom_call.1} parent=1 // pred_check_branch
      %26 = sbr.rel (0) target = $region9
    $region8: #{tpu_custom_call.1} parent=1 // pred_region
      %28 = vsyncadd [#allocation5], 0
      %s29 = sshll.u32 %s1, 4
      %s30 = int_to_ptr.hbm [resolvable:$true] %s29
      %s31 = sshll.u32 [#allocation4], 4
      %s32 = int_to_ptr.vmem [resolvable:$true] %s31
      %37 = dma.hbm_to_vmem [thread:$0]  %s30, 256, %s32, [#allocation5], 128, 128, 8
    $region9: #{tpu_custom_call.1} parent=1 // pred_fallthru
      _
    // Predicated region
    $region10: #{tpu_custom_call.1} parent=1 // pred_check
      _
    $region11: #{tpu_custom_call.1} parent=1 // pred_check_branch
      %39 = sbr.rel (0) target = $region13
    $region12: #{tpu_custom_call.1} parent=1 // pred_region
      %41 = vsyncadd [#allocation8], 0
      %s42 = sshll.u32 %s2, 4
      %s43 = int_to_ptr.hbm [resolvable:$true] %s42
      %s44 = sshll.u32 [#allocation7], 4
      %s45 = int_to_ptr.vmem [resolvable:$true] %s44
      %50 = dma.hbm_to_vmem [thread:$0]  %s43, 256, %s45, [#allocation8], 128, 128, 8
    $region13: #{tpu_custom_call.1} parent=1 // pred_fallthru
      _
    // Predicated region
    $region14: #{tpu_custom_call.1} parent=1 // pred_check
      _
    $region15: #{tpu_custom_call.1} parent=1 // pred_check_branch
      %52 = sbr.rel (0) target = $region17
    $region16: #{tpu_custom_call.1} parent=1 // pred_region
      _
    $region17: #{tpu_custom_call.1} parent=1 // pred_fallthru
      _
    // Predicated region
    $region18: #{tpu_custom_call.1} parent=1 // pred_check
      _
    $region19: #{tpu_custom_call.1} parent=1 // pred_check_branch
      %54 = sbr.rel (0) target = $region21
    $region20: #{tpu_custom_call.1} parent=1 // pred_region
      _
    $region21: #{tpu_custom_call.1} parent=1 // pred_fallthru
      _
    // Predicated region
    $region22: #{tpu_custom_call.1} parent=1 // pred_check
      _
    $region23: #{tpu_custom_call.1} parent=1 // pred_check_branch
      %56 = sbr.rel (0) target = $region25
    $region24: #{tpu_custom_call.1} parent=1 // pred_region
      _
    $region25: #{tpu_custom_call.1} parent=1 // pred_fallthru
      _
    // Predicated region
    $region26: #{tpu_custom_call.1} parent=1 // pred_check
      _
    $region27: #{tpu_custom_call.1} parent=1 // pred_check_branch
      %58 = sbr.rel (0) target = $region29
    $region28: #{tpu_custom_call.1} parent=1 // pred_region
      _
    $region29: #{tpu_custom_call.1} parent=1 // pred_fallthru
      _
    // Predicated region
    $region30: #{tpu_custom_call.1} parent=1 // pred_check
      _
    $region31: #{tpu_custom_call.1} parent=1 // pred_check_branch
      %60 = sbr.rel (0) target = $region33
    $region32: #{tpu_custom_call.1} parent=1 // pred_region
      _
    $region33: #{tpu_custom_call.1} parent=1 // pred_fallthru
      _
    // Predicated region
    $region34: #{tpu_custom_call.1} parent=1 // pred_check
      _
    $region35: #{tpu_custom_call.1} parent=1 // pred_check_branch
      %62 = sbr.rel (0) target = $region37
    $region36: #{tpu_custom_call.1} parent=1 // pred_region
      _
    $region37: #{tpu_custom_call.1} parent=1 // pred_fallthru
      _
    // Predicated region
    $region38: #{tpu_custom_call.1} parent=1 // pred_check
      _
    $region39: #{tpu_custom_call.1} parent=1 // pred_check_branch
      %64 = sbr.rel (0) target = $region41
    $region40: #{tpu_custom_call.1} parent=1 // pred_region
      _
    $region41: #{tpu_custom_call.1} parent=1 // pred_fallthru
      _
    // Predicated region
    $region42: #{tpu_custom_call.1} parent=1 // pred_check
      _
    $region43: #{tpu_custom_call.1} parent=1 // pred_check_branch
      %66 = sbr.rel (0) target = $region45
    $region44: #{tpu_custom_call.1} parent=1 // pred_region
      _
    $region45: #{tpu_custom_call.1} parent=1 // pred_fallthru
      _
    // Predicated region
    $region46: #{tpu_custom_call.1} parent=1 // pred_check
      _
    $region47: #{tpu_custom_call.1} parent=1 // pred_check_branch
      %68 = sbr.rel (0) target = $region49
    $region48: #{tpu_custom_call.1} parent=1 // pred_region
      %70 = dma.done [#allocation5], 256
    $region49: #{tpu_custom_call.1} parent=1 // pred_fallthru
      _
    // Predicated region
    $region50: #{tpu_custom_call.1} parent=1 // pred_check
      _
    $region51: #{tpu_custom_call.1} parent=1 // pred_check_branch
      %72 = sbr.rel (0) target = $region53
    $region52: #{tpu_custom_call.1} parent=1 // pred_region
      %74 = dma.done [#allocation8], 256
    $region53: #{tpu_custom_call.1} parent=1 // pred_fallthru
      _
    %v75 = vld [vmem:[%s3] sm:$0xff]
    %v76 = vld [vmem:[%s3 + $0x8] sm:$0xff]
    %v77 = vld [vmem:[%s3 + $0x10] sm:$0xff]
    %v78 = vld [vmem:[%s3 + $0x18] sm:$0xff]
    %v79 = vld [vmem:[%s4] sm:$0xff]
    %v80 = vld [vmem:[%s4 + $0x8] sm:$0xff]
    %v81 = vld [vmem:[%s4 + $0x10] sm:$0xff]
    %v82 = vld [vmem:[%s4 + $0x18] sm:$0xff]
    %v83 = vld [vmem:[%s5] sm:$0x1]
    %v84 = vld [vmem:[%s0] sm:$0xff]
    %v85 = vld [vmem:[%s0 + $0x8] sm:$0xff]
    %v86 = vld [vmem:[%s0 + $0x10] sm:$0xff]
    %v87 = vld [vmem:[%s0 + $0x18] sm:$0xff]
    %v88 = vld [vmem:[%s0 + $0x20] sm:$0xff]
    %v89 = vld [vmem:[%s0 + $0x28] sm:$0xff]
    %v90 = vld [vmem:[%s0 + $0x30] sm:$0xff]
    %v91 = vld [vmem:[%s0 + $0x38] sm:$0xff]
    %v93 = vperm.slane %v83, 0
    %vm95 = vcmask 261120
    %v97 = vsel %vm95, %v84, 0
    %v100 = vsel %vm95, %v85, 0
    %v103 = vsel %vm95, %v86, 0
    %v106 = vsel %vm95, %v87, 0
    %v109 = vsel %vm95, %v88, 0
    %v112 = vsel %vm95, %v89, 0
    %v115 = vsel %vm95, %v90, 0
    %v118 = vsel %vm95, %v91, 0
    %120 = vmatpush.msra.mxu0 0.0
    %121 = vmatpush.msra.mxu0 0.0
    %122 = vmatpush.msra.mxu0 0.0
    %123 = vmatpush.msra.mxu0 0.0
    %124 = vmatpush.msra.mxu0 0.0
    %125 = vmatpush.msra.mxu0 0.0
    %126 = vmatpush.msra.mxu0 0.0
    %127 = vmatpush.msra.mxu0 0.0
    %128 = vmatpush.msra.mxu0 0.0
    %129 = vmatpush.msra.mxu0 0.0
    %130 = vmatpush.msra.mxu0 0.0
    %131 = vmatpush.msra.mxu0 0.0
    %132 = vmatpush.msra.mxu0 %v78
    %133 = vmatpush.msra.mxu0 %v77
    %134 = vmatpush.msra.mxu0 %v76
    %135 = vmatpush.msra.mxu0 %v75
    %136 = vmatmul.f32.gmra.mxu0 %v97
    %v137 = vpop.f32.mrf.mxu0
    %v138 = vadd.f32 %v93, %v137
    %139 = vmatmul.f32.gmra.mxu0 %v100
    %v140 = vpop.f32.mrf.mxu0
    %v141 = vadd.f32 %v93, %v140
    %142 = vmatmul.f32.gmra.mxu0 %v103
    %v143 = vpop.f32.mrf.mxu0
    %v144 = vadd.f32 %v93, %v143
    %145 = vmatmul.f32.gmra.mxu0 %v106
    %v146 = vpop.f32.mrf.mxu0
    %v147 = vadd.f32 %v93, %v146
    %148 = vmatmul.f32.gmra.mxu0 %v109
    %v149 = vpop.f32.mrf.mxu0
    %v150 = vadd.f32 %v93, %v149
    %151 = vmatmul.f32.gmra.mxu0 %v112
    %v152 = vpop.f32.mrf.mxu0
    %v153 = vadd.f32 %v93, %v152
    %154 = vmatmul.f32.gmra.mxu0 %v115
    %v155 = vpop.f32.mrf.mxu0
    %v156 = vadd.f32 %v93, %v155
    %157 = vmatmul.f32.gmra.mxu0 %v118
    %v158 = vpop.f32.mrf.mxu0
    %v159 = vadd.f32 %v93, %v158
    %160 = vdwg.mxu0
    %161 = vst [vmem:[#allocation2] sm:$0xff] %v138
    %162 = vst [vmem:[#allocation2 + $0x8] sm:$0xff] %v141
    %163 = vst [vmem:[#allocation2 + $0x10] sm:$0xff] %v144
    %164 = vst [vmem:[#allocation2 + $0x18] sm:$0xff] %v147
    %165 = vst [vmem:[#allocation2 + $0x20] sm:$0xff] %v150
    %166 = vst [vmem:[#allocation2 + $0x28] sm:$0xff] %v153
    %167 = vst [vmem:[#allocation2 + $0x30] sm:$0xff] %v156
    %168 = vst [vmem:[#allocation2 + $0x38] sm:$0xff] %v159
    %v169 = vld [vmem:[#allocation4] sm:$0xff]
    %v170 = vld [vmem:[#allocation7] sm:$0xff]
    %v171 = vld [vmem:[#allocation2] sm:$0xff]
    %v173 = vsel %vm95, %v169, 0
    %175 = vmatpush.msra.mxu0 0.0
    %176 = vmatpush.msra.mxu0 0.0
    %177 = vmatpush.msra.mxu0 0.0
    %178 = vmatpush.msra.mxu0 0.0
    %179 = vmatpush.msra.mxu0 0.0
    %180 = vmatpush.msra.mxu0 0.0
    %181 = vmatpush.msra.mxu0 0.0
    %182 = vmatpush.msra.mxu0 0.0
    %183 = vmatpush.msra.mxu0 0.0
    %184 = vmatpush.msra.mxu0 0.0
    %185 = vmatpush.msra.mxu0 0.0
    %186 = vmatpush.msra.mxu0 0.0
    %187 = vmatpush.msra.mxu0 %v82
    %188 = vmatpush.msra.mxu0 %v81
    %189 = vmatpush.msra.mxu0 %v80
    %190 = vmatpush.msra.mxu0 %v79
    %191 = vmatmul.f32.gmra.mxu0 %v173
    %v192 = vpop.f32.mrf.mxu0
    %v193 = vadd.f32 0.0, %v192
    %194 = vdwg.mxu0
    %v195 = vadd.f32 %v171, %v193
    %v196 = vxor.u32 %v195, 2147483648
    %v197 = vmul.f32 %v196, 1.442695
    %v198 = vpow.pop %v197
    %v199 = vadd.f32 %v198, 1.0
    %v200 = vrcp.pop %v199
    %v201 = vmul.f32 %v199, %v200
    %v202 = vsub.f32 1.0, %v201
    %v203 = vmul.f32 %v200, %v202
    %v204 = vadd.f32 %v200, %v203
    %vm205 = vweird.f32 %v199
    %vm206 = vweird.f32 %v200
    %vm207 = vmor %vm205, %vm206
    %v208 = vsel %vm207, %v200, %v204
    %v209 = vand.u32 2147483647, %v199
    %vm210 = vcmp.eq.f32.partialorder %v209, 8.507059e+37
    %v211 = vand.u32 %v199, 2147483648
    %v212 = vor.u32 1.1754944e-38, %v211
    %v213 = vsel %vm210, %v212, %v208
    %v214 = vmul.f32 1.0, %v213
    %v215 = vmul.f32 %v214, 2.0
    %v216 = vsub.f32 %v215, 1.0
    %218 = vrot.lane.b32.xlu0 %v170, 32
    %v219 = vpop.permute.xlu0 %218
    %v221 = vmul.f32 %v214, %v219
    %223 = vrot.lane.b32.xlu0 %v216, 64
    %v224 = vpop.permute.xlu0 %223
    %v226 = vmul.f32 %v214, %v224
    %228 = vrot.lane.b32.xlu0 %v226, 32
    %v229 = vpop.permute.xlu0 %228
    %v231 = vadd.f32 %v221, %v229
    %v232 = vtanh.pop %v231
    %234 = vrot.lane.b32.xlu0 %v232, 64
    %v235 = vpop.permute.xlu0 %234
    %v237 = vmul.f32 %v214, %v235
    %239 = vrot.lane.b32.xlu0 %v237, 32
    %v240 = vpop.permute.xlu0 %239
    %242 = vst.msk [vmem:[#allocation3] sm:$0xff] %vm95, %v240
    %v243 = vld [vmem:[#allocation2 + $0x8] sm:$0xff]
    %v244 = vsel %vm95, %v240, 0
    %246 = vmatpush.msra.mxu0 0.0
    %247 = vmatpush.msra.mxu0 0.0
    %248 = vmatpush.msra.mxu0 0.0
    %249 = vmatpush.msra.mxu0 0.0
    %250 = vmatpush.msra.mxu0 0.0
    %251 = vmatpush.msra.mxu0 0.0
    %252 = vmatpush.msra.mxu0 0.0
    %253 = vmatpush.msra.mxu0 0.0
    %254 = vmatpush.msra.mxu0 0.0
    %255 = vmatpush.msra.mxu0 0.0
    %256 = vmatpush.msra.mxu0 0.0
    %257 = vmatpush.msra.mxu0 0.0
    %258 = vmatpush.msra.mxu0 %v82
    %259 = vmatpush.msra.mxu0 %v81
    %260 = vmatpush.msra.mxu0 %v80
    %261 = vmatpush.msra.mxu0 %v79
    %262 = vmatmul.f32.gmra.mxu0 %v244
    %v263 = vpop.f32.mrf.mxu0
    %v264 = vadd.f32 0.0, %v263
    %265 = vdwg.mxu0
    %v266 = vadd.f32 %v243, %v264
    %v267 = vxor.u32 %v266, 2147483648
    %v268 = vmul.f32 %v267, 1.442695
    %v269 = vpow.pop %v268
    %v270 = vadd.f32 %v269, 1.0
    %v271 = vrcp.pop %v270
    %v272 = vmul.f32 %v270, %v271
    %v273 = vsub.f32 1.0, %v272
    %v274 = vmul.f32 %v271, %v273
    %v275 = vadd.f32 %v271, %v274
    %vm276 = vweird.f32 %v270
    %vm277 = vweird.f32 %v271
    %vm278 = vmor %vm276, %vm277
    %v279 = vsel %vm278, %v271, %v275
    %v280 = vand.u32 2147483647, %v270
    %vm281 = vcmp.eq.f32.partialorder %v280, 8.507059e+37
    %v282 = vand.u32 %v270, 2147483648
    %v283 = vor.u32 1.1754944e-38, %v282
    %v284 = vsel %vm281, %v283, %v279
    %v285 = vmul.f32 1.0, %v284
    %v286 = vmul.f32 %v285, 2.0
    %v287 = vsub.f32 %v286, 1.0
    %v288 = vmul.f32 %v285, %v231
    %290 = vrot.lane.b32.xlu0 %v287, 64
    %v291 = vpop.permute.xlu0 %290
    %v293 = vmul.f32 %v285, %v291
    %295 = vrot.lane.b32.xlu0 %v293, 32
    %v296 = vpop.permute.xlu0 %295
    %v298 = vadd.f32 %v288, %v296
    %v299 = vtanh.pop %v298
    %301 = vrot.lane.b32.xlu0 %v299, 64
    %v302 = vpop.permute.xlu0 %301
    %v304 = vmul.f32 %v285, %v302
    %306 = vrot.lane.b32.xlu0 %v304, 32
    %v307 = vpop.permute.xlu0 %306
    %309 = vst.msk [vmem:[#allocation3 + $0x8] sm:$0xff] %vm95, %v307
    %v310 = vld [vmem:[#allocation2 + $0x10] sm:$0xff]
    %v311 = vsel %vm95, %v307, 0
    %313 = vmatpush.msra.mxu0 0.0
    %314 = vmatpush.msra.mxu0 0.0
    %315 = vmatpush.msra.mxu0 0.0
    %316 = vmatpush.msra.mxu0 0.0
    %317 = vmatpush.msra.mxu0 0.0
    %318 = vmatpush.msra.mxu0 0.0
    %319 = vmatpush.msra.mxu0 0.0
    %320 = vmatpush.msra.mxu0 0.0
    %321 = vmatpush.msra.mxu0 0.0
    %322 = vmatpush.msra.mxu0 0.0
    %323 = vmatpush.msra.mxu0 0.0
    %324 = vmatpush.msra.mxu0 0.0
    %325 = vmatpush.msra.mxu0 %v82
    %326 = vmatpush.msra.mxu0 %v81
    %327 = vmatpush.msra.mxu0 %v80
    %328 = vmatpush.msra.mxu0 %v79
    %329 = vmatmul.f32.gmra.mxu0 %v311
    %v330 = vpop.f32.mrf.mxu0
    %v331 = vadd.f32 0.0, %v330
    %332 = vdwg.mxu0
    %v333 = vadd.f32 %v310, %v331
    %v334 = vxor.u32 %v333, 2147483648
    %v335 = vmul.f32 %v334, 1.442695
    %v336 = vpow.pop %v335
    %v337 = vadd.f32 %v336, 1.0
    %v338 = vrcp.pop %v337
    %v339 = vmul.f32 %v337, %v338
    %v340 = vsub.f32 1.0, %v339
    %v341 = vmul.f32 %v338, %v340
    %v342 = vadd.f32 %v338, %v341
    %vm343 = vweird.f32 %v337
    %vm344 = vweird.f32 %v338
    %vm345 = vmor %vm343, %vm344
    %v346 = vsel %vm345, %v338, %v342
    %v347 = vand.u32 2147483647, %v337
    %vm348 = vcmp.eq.f32.partialorder %v347, 8.507059e+37
    %v349 = vand.u32 %v337, 2147483648
    %v350 = vor.u32 1.1754944e-38, %v349
    %v351 = vsel %vm348, %v350, %v346
    %v352 = vmul.f32 1.0, %v351
    %v353 = vmul.f32 %v352, 2.0
    %v354 = vsub.f32 %v353, 1.0
    %v355 = vmul.f32 %v352, %v298
    %357 = vrot.lane.b32.xlu0 %v354, 64
    %v358 = vpop.permute.xlu0 %357
    %v360 = vmul.f32 %v352, %v358
    %362 = vrot.lane.b32.xlu0 %v360, 32
    %v363 = vpop.permute.xlu0 %362
    %v365 = vadd.f32 %v355, %v363
    %v366 = vtanh.pop %v365
    %368 = vrot.lane.b32.xlu0 %v366, 64
    %v369 = vpop.permute.xlu0 %368
    %v371 = vmul.f32 %v352, %v369
    %373 = vrot.lane.b32.xlu0 %v371, 32
    %v374 = vpop.permute.xlu0 %373
    %376 = vst.msk [vmem:[#allocation3 + $0x10] sm:$0xff] %vm95, %v374
    %v377 = vld [vmem:[#allocation2 + $0x18] sm:$0xff]
    %v378 = vsel %vm95, %v374, 0
    %380 = vmatpush.msra.mxu0 0.0
    %381 = vmatpush.msra.mxu0 0.0
    %382 = vmatpush.msra.mxu0 0.0
    %383 = vmatpush.msra.mxu0 0.0
    %384 = vmatpush.msra.mxu0 0.0
    %385 = vmatpush.msra.mxu0 0.0
    %386 = vmatpush.msra.mxu0 0.0
    %387 = vmatpush.msra.mxu0 0.0
    %388 = vmatpush.msra.mxu0 0.0
    %389 = vmatpush.msra.mxu0 0.0
    %390 = vmatpush.msra.mxu0 0.0
    %391 = vmatpush.msra.mxu0 0.0
    %392 = vmatpush.msra.mxu0 %v82
    %393 = vmatpush.msra.mxu0 %v81
    %394 = vmatpush.msra.mxu0 %v80
    %395 = vmatpush.msra.mxu0 %v79
    %396 = vmatmul.f32.gmra.mxu0 %v378
    %v397 = vpop.f32.mrf.mxu0
    %v398 = vadd.f32 0.0, %v397
    %399 = vdwg.mxu0
    %v400 = vadd.f32 %v377, %v398
    %v401 = vxor.u32 %v400, 2147483648
    %v402 = vmul.f32 %v401, 1.442695
    %v403 = vpow.pop %v402
    %v404 = vadd.f32 %v403, 1.0
    %v405 = vrcp.pop %v404
    %v406 = vmul.f32 %v404, %v405
    %v407 = vsub.f32 1.0, %v406
    %v408 = vmul.f32 %v405, %v407
    %v409 = vadd.f32 %v405, %v408
    %vm410 = vweird.f32 %v404
    %vm411 = vweird.f32 %v405
    %vm412 = vmor %vm410, %vm411
    %v413 = vsel %vm412, %v405, %v409
    %v414 = vand.u32 2147483647, %v404
    %vm415 = vcmp.eq.f32.partialorder %v414, 8.507059e+37
    %v416 = vand.u32 %v404, 2147483648
    %v417 = vor.u32 1.1754944e-38, %v416
    %v418 = vsel %vm415, %v417, %v413
    %v419 = vmul.f32 1.0, %v418
    %v420 = vmul.f32 %v419, 2.0
    %v421 = vsub.f32 %v420, 1.0
    %v422 = vmul.f32 %v419, %v365
    %424 = vrot.lane.b32.xlu0 %v421, 64
    %v425 = vpop.permute.xlu0 %424
    %v427 = vmul.f32 %v419, %v425
    %429 = vrot.lane.b32.xlu0 %v427, 32
    %v430 = vpop.permute.xlu0 %429
    %v432 = vadd.f32 %v422, %v430
    %v433 = vtanh.pop %v432
    %435 = vrot.lane.b32.xlu0 %v433, 64
    %v436 = vpop.permute.xlu0 %435
    %v438 = vmul.f32 %v419, %v436
    %440 = vrot.lane.b32.xlu0 %v438, 32
    %v441 = vpop.permute.xlu0 %440
    %443 = vst.msk [vmem:[#allocation3 + $0x18] sm:$0xff] %vm95, %v441
    %v444 = vld [vmem:[#allocation2 + $0x20] sm:$0xff]
    %v445 = vsel %vm95, %v441, 0
    %447 = vmatpush.msra.mxu0 0.0
    %448 = vmatpush.msra.mxu0 0.0
    %449 = vmatpush.msra.mxu0 0.0
    %450 = vmatpush.msra.mxu0 0.0
    %451 = vmatpush.msra.mxu0 0.0
    %452 = vmatpush.msra.mxu0 0.0
    %453 = vmatpush.msra.mxu0 0.0
    %454 = vmatpush.msra.mxu0 0.0
    %455 = vmatpush.msra.mxu0 0.0
    %456 = vmatpush.msra.mxu0 0.0
    %457 = vmatpush.msra.mxu0 0.0
    %458 = vmatpush.msra.mxu0 0.0
    %459 = vmatpush.msra.mxu0 %v82
    %460 = vmatpush.msra.mxu0 %v81
    %461 = vmatpush.msra.mxu0 %v80
    %462 = vmatpush.msra.mxu0 %v79
    %463 = vmatmul.f32.gmra.mxu0 %v445
    %v464 = vpop.f32.mrf.mxu0
    %v465 = vadd.f32 0.0, %v464
    %466 = vdwg.mxu0
    %v467 = vadd.f32 %v444, %v465
    %v468 = vxor.u32 %v467, 2147483648
    %v469 = vmul.f32 %v468, 1.442695
    %v470 = vpow.pop %v469
    %v471 = vadd.f32 %v470, 1.0
    %v472 = vrcp.pop %v471
    %v473 = vmul.f32 %v471, %v472
    %v474 = vsub.f32 1.0, %v473
    %v475 = vmul.f32 %v472, %v474
    %v476 = vadd.f32 %v472, %v475
    %vm477 = vweird.f32 %v471
    %vm478 = vweird.f32 %v472
    %vm479 = vmor %vm477, %vm478
    %v480 = vsel %vm479, %v472, %v476
    %v481 = vand.u32 2147483647, %v471
    %vm482 = vcmp.eq.f32.partialorder %v481, 8.507059e+37
    %v483 = vand.u32 %v471, 2147483648
    %v484 = vor.u32 1.1754944e-38, %v483
    %v485 = vsel %vm482, %v484, %v480
    %v486 = vmul.f32 1.0, %v485
    %v487 = vmul.f32 %v486, 2.0
    %v488 = vsub.f32 %v487, 1.0
    %v489 = vmul.f32 %v486, %v432
    %491 = vrot.lane.b32.xlu0 %v488, 64
    %v492 = vpop.permute.xlu0 %491
    %v494 = vmul.f32 %v486, %v492
    %496 = vrot.lane.b32.xlu0 %v494, 32
    %v497 = vpop.permute.xlu0 %496
    %v499 = vadd.f32 %v489, %v497
    %v500 = vtanh.pop %v499
    %502 = vrot.lane.b32.xlu0 %v500, 64
    %v503 = vpop.permute.xlu0 %502
    %v505 = vmul.f32 %v486, %v503
    %507 = vrot.lane.b32.xlu0 %v505, 32
    %v508 = vpop.permute.xlu0 %507
    %510 = vst.msk [vmem:[#allocation3 + $0x20] sm:$0xff] %vm95, %v508
    %v511 = vld [vmem:[#allocation2 + $0x28] sm:$0xff]
    %v512 = vsel %vm95, %v508, 0
    %514 = vmatpush.msra.mxu0 0.0
    %515 = vmatpush.msra.mxu0 0.0
    %516 = vmatpush.msra.mxu0 0.0
    %517 = vmatpush.msra.mxu0 0.0
    %518 = vmatpush.msra.mxu0 0.0
    %519 = vmatpush.msra.mxu0 0.0
    %520 = vmatpush.msra.mxu0 0.0
    %521 = vmatpush.msra.mxu0 0.0
    %522 = vmatpush.msra.mxu0 0.0
    %523 = vmatpush.msra.mxu0 0.0
    %524 = vmatpush.msra.mxu0 0.0
    %525 = vmatpush.msra.mxu0 0.0
    %526 = vmatpush.msra.mxu0 %v82
    %527 = vmatpush.msra.mxu0 %v81
    %528 = vmatpush.msra.mxu0 %v80
    %529 = vmatpush.msra.mxu0 %v79
    %530 = vmatmul.f32.gmra.mxu0 %v512
    %v531 = vpop.f32.mrf.mxu0
    %v532 = vadd.f32 0.0, %v531
    %533 = vdwg.mxu0
    %v534 = vadd.f32 %v511, %v532
    %v535 = vxor.u32 %v534, 2147483648
    %v536 = vmul.f32 %v535, 1.442695
    %v537 = vpow.pop %v536
    %v538 = vadd.f32 %v537, 1.0
    %v539 = vrcp.pop %v538
    %v540 = vmul.f32 %v538, %v539
    %v541 = vsub.f32 1.0, %v540
    %v542 = vmul.f32 %v539, %v541
    %v543 = vadd.f32 %v539, %v542
    %vm544 = vweird.f32 %v538
    %vm545 = vweird.f32 %v539
    %vm546 = vmor %vm544, %vm545
    %v547 = vsel %vm546, %v539, %v543
    %v548 = vand.u32 2147483647, %v538
    %vm549 = vcmp.eq.f32.partialorder %v548, 8.507059e+37
    %v550 = vand.u32 %v538, 2147483648
    %v551 = vor.u32 1.1754944e-38, %v550
    %v552 = vsel %vm549, %v551, %v547
    %v553 = vmul.f32 1.0, %v552
    %v554 = vmul.f32 %v553, 2.0
    %v555 = vsub.f32 %v554, 1.0
    %v556 = vmul.f32 %v553, %v499
    %558 = vrot.lane.b32.xlu0 %v555, 64
    %v559 = vpop.permute.xlu0 %558
    %v561 = vmul.f32 %v553, %v559
    %563 = vrot.lane.b32.xlu0 %v561, 32
    %v564 = vpop.permute.xlu0 %563
    %v566 = vadd.f32 %v556, %v564
    %v567 = vtanh.pop %v566
    %569 = vrot.lane.b32.xlu0 %v567, 64
    %v570 = vpop.permute.xlu0 %569
    %v572 = vmul.f32 %v553, %v570
    %574 = vrot.lane.b32.xlu0 %v572, 32
    %v575 = vpop.permute.xlu0 %574
    %577 = vst.msk [vmem:[#allocation3 + $0x28] sm:$0xff] %vm95, %v575
    %v578 = vld [vmem:[#allocation2 + $0x30] sm:$0xff]
    %v579 = vsel %vm95, %v575, 0
    %581 = vmatpush.msra.mxu0 0.0
    %582 = vmatpush.msra.mxu0 0.0
    %583 = vmatpush.msra.mxu0 0.0
    %584 = vmatpush.msra.mxu0 0.0
    %585 = vmatpush.msra.mxu0 0.0
    %586 = vmatpush.msra.mxu0 0.0
    %587 = vmatpush.msra.mxu0 0.0
    %588 = vmatpush.msra.mxu0 0.0
    %589 = vmatpush.msra.mxu0 0.0
    %590 = vmatpush.msra.mxu0 0.0
    %591 = vmatpush.msra.mxu0 0.0
    %592 = vmatpush.msra.mxu0 0.0
    %593 = vmatpush.msra.mxu0 %v82
    %594 = vmatpush.msra.mxu0 %v81
    %595 = vmatpush.msra.mxu0 %v80
    %596 = vmatpush.msra.mxu0 %v79
    %597 = vmatmul.f32.gmra.mxu0 %v579
    %v598 = vpop.f32.mrf.mxu0
    %v599 = vadd.f32 0.0, %v598
    %600 = vdwg.mxu0
    %v601 = vadd.f32 %v578, %v599
    %v602 = vxor.u32 %v601, 2147483648
    %v603 = vmul.f32 %v602, 1.442695
    %v604 = vpow.pop %v603
    %v605 = vadd.f32 %v604, 1.0
    %v606 = vrcp.pop %v605
    %v607 = vmul.f32 %v605, %v606
    %v608 = vsub.f32 1.0, %v607
    %v609 = vmul.f32 %v606, %v608
    %v610 = vadd.f32 %v606, %v609
    %vm611 = vweird.f32 %v605
    %vm612 = vweird.f32 %v606
    %vm613 = vmor %vm611, %vm612
    %v614 = vsel %vm613, %v606, %v610
    %v615 = vand.u32 2147483647, %v605
    %vm616 = vcmp.eq.f32.partialorder %v615, 8.507059e+37
    %v617 = vand.u32 %v605, 2147483648
    %v618 = vor.u32 1.1754944e-38, %v617
    %v619 = vsel %vm616, %v618, %v614
    %v620 = vmul.f32 1.0, %v619
    %v621 = vmul.f32 %v620, 2.0
    %v622 = vsub.f32 %v621, 1.0
    %v623 = vmul.f32 %v620, %v566
    %625 = vrot.lane.b32.xlu0 %v622, 64
    %v626 = vpop.permute.xlu0 %625
    %v628 = vmul.f32 %v620, %v626
    %630 = vrot.lane.b32.xlu0 %v628, 32
    %v631 = vpop.permute.xlu0 %630
    %v633 = vadd.f32 %v623, %v631
    %v634 = vtanh.pop %v633
    %636 = vrot.lane.b32.xlu0 %v634, 64
    %v637 = vpop.permute.xlu0 %636
    %v639 = vmul.f32 %v620, %v637
    %641 = vrot.lane.b32.xlu0 %v639, 32
    %v642 = vpop.permute.xlu0 %641
    %644 = vst.msk [vmem:[#allocation3 + $0x30] sm:$0xff] %vm95, %v642
    %v645 = vld [vmem:[#allocation2 + $0x38] sm:$0xff]
    %v646 = vsel %vm95, %v642, 0
    %648 = vmatpush.msra.mxu0 0.0
    %649 = vmatpush.msra.mxu0 0.0
    %650 = vmatpush.msra.mxu0 0.0
    %651 = vmatpush.msra.mxu0 0.0
    %652 = vmatpush.msra.mxu0 0.0
    %653 = vmatpush.msra.mxu0 0.0
    %654 = vmatpush.msra.mxu0 0.0
    %655 = vmatpush.msra.mxu0 0.0
    %656 = vmatpush.msra.mxu0 0.0
    %657 = vmatpush.msra.mxu0 0.0
    %658 = vmatpush.msra.mxu0 0.0
    %659 = vmatpush.msra.mxu0 0.0
    %660 = vmatpush.msra.mxu0 %v82
    %661 = vmatpush.msra.mxu0 %v81
    %662 = vmatpush.msra.mxu0 %v80
    %663 = vmatpush.msra.mxu0 %v79
    %664 = vmatmul.f32.gmra.mxu0 %v646
    %v665 = vpop.f32.mrf.mxu0
    %v666 = vadd.f32 0.0, %v665
    %667 = vdwg.mxu0
    %v668 = vadd.f32 %v645, %v666
    %v669 = vxor.u32 %v668, 2147483648
    %v670 = vmul.f32 %v669, 1.442695
    %v671 = vpow.pop %v670
    %v672 = vadd.f32 %v671, 1.0
    %v673 = vrcp.pop %v672
    %v674 = vmul.f32 %v672, %v673
    %v675 = vsub.f32 1.0, %v674
    %v676 = vmul.f32 %v673, %v675
    %v677 = vadd.f32 %v673, %v676
    %vm678 = vweird.f32 %v672
    %vm679 = vweird.f32 %v673
    %vm680 = vmor %vm678, %vm679
    %v681 = vsel %vm680, %v673, %v677
    %v682 = vand.u32 2147483647, %v672
    %vm683 = vcmp.eq.f32.partialorder %v682, 8.507059e+37
    %v684 = vand.u32 %v672, 2147483648
    %v685 = vor.u32 1.1754944e-38, %v684
    %v686 = vsel %vm683, %v685, %v681
    %v687 = vmul.f32 1.0, %v686
    %v688 = vmul.f32 %v687, 2.0
    %v689 = vsub.f32 %v688, 1.0
    %v690 = vmul.f32 %v687, %v633
    %692 = vrot.lane.b32.xlu0 %v689, 64
    %v693 = vpop.permute.xlu0 %692
    %v695 = vmul.f32 %v687, %v693
    %697 = vrot.lane.b32.xlu0 %v695, 32
    %v698 = vpop.permute.xlu0 %697
    %v700 = vadd.f32 %v690, %v698
    %v701 = vtanh.pop %v700
    %703 = vrot.lane.b32.xlu0 %v701, 64
    %v704 = vpop.permute.xlu0 %703
    %v706 = vmul.f32 %v687, %v704
    %708 = vrot.lane.b32.xlu0 %v706, 32
    %v709 = vpop.permute.xlu0 %708
    %711 = vst.msk [vmem:[#allocation3 + $0x38] sm:$0xff] %vm95, %v709
    %712 = vst.msk [vmem:[#allocation10] sm:$0xff] %vm95, %v709
    %714 = vrot.lane.b32.xlu0 %v700, 96
    %v715 = vpop.permute.xlu0 %714
    %717 = vst.msk [vmem:[#allocation12] sm:$0xff] %vm95, %v715
    %v718 = vld [vmem:[%s6] sm:$0xff]
    %v719 = vld [vmem:[%s6 + $0x8] sm:$0xff]
    %v720 = vld [vmem:[%s6 + $0x10] sm:$0xff]
    %v721 = vld [vmem:[%s6 + $0x18] sm:$0xff]
    %v722 = vld [vmem:[%s7] sm:$0xff]
    %v723 = vld [vmem:[%s7 + $0x8] sm:$0xff]
    %v724 = vld [vmem:[%s7 + $0x10] sm:$0xff]
    %v725 = vld [vmem:[%s7 + $0x18] sm:$0xff]
    %v726 = vld [vmem:[%s8] sm:$0x1]
    %v727 = vld [vmem:[#allocation3] sm:$0xff]
    %v728 = vld [vmem:[#allocation3 + $0x8] sm:$0xff]
    %v729 = vld [vmem:[#allocation3 + $0x10] sm:$0xff]
    %v730 = vld [vmem:[#allocation3 + $0x18] sm:$0xff]
    %v731 = vld [vmem:[#allocation3 + $0x20] sm:$0xff]
    %v732 = vld [vmem:[#allocation3 + $0x28] sm:$0xff]
    %v733 = vld [vmem:[#allocation3 + $0x30] sm:$0xff]
    %v734 = vld [vmem:[#allocation3 + $0x38] sm:$0xff]
    %v736 = vperm.slane %v726, 0
    %v739 = vsel %vm95, %v727, 0
    %v742 = vsel %vm95, %v728, 0
    %v745 = vsel %vm95, %v729, 0
    %v748 = vsel %vm95, %v730, 0
    %v751 = vsel %vm95, %v731, 0
    %v754 = vsel %vm95, %v732, 0
    %v757 = vsel %vm95, %v733, 0
    %v760 = vsel %vm95, %v734, 0
    %762 = vmatpush.msra.mxu0 0.0
    %763 = vmatpush.msra.mxu0 0.0
    %764 = vmatpush.msra.mxu0 0.0
    %765 = vmatpush.msra.mxu0 0.0
    %766 = vmatpush.msra.mxu0 0.0
    %767 = vmatpush.msra.mxu0 0.0
    %768 = vmatpush.msra.mxu0 0.0
    %769 = vmatpush.msra.mxu0 0.0
    %770 = vmatpush.msra.mxu0 0.0
    %771 = vmatpush.msra.mxu0 0.0
    %772 = vmatpush.msra.mxu0 0.0
    %773 = vmatpush.msra.mxu0 0.0
    %774 = vmatpush.msra.mxu0 %v721
    %775 = vmatpush.msra.mxu0 %v720
    %776 = vmatpush.msra.mxu0 %v719
    %777 = vmatpush.msra.mxu0 %v718
    %778 = vmatmul.f32.gmra.mxu0 %v739
    %v779 = vpop.f32.mrf.mxu0
    %v780 = vadd.f32 %v736, %v779
    %781 = vmatmul.f32.gmra.mxu0 %v742
    %v782 = vpop.f32.mrf.mxu0
    %v783 = vadd.f32 %v736, %v782
    %784 = vmatmul.f32.gmra.mxu0 %v745
    %v785 = vpop.f32.mrf.mxu0
    %v786 = vadd.f32 %v736, %v785
    %787 = vmatmul.f32.gmra.mxu0 %v748
    %v788 = vpop.f32.mrf.mxu0
    %v789 = vadd.f32 %v736, %v788
    %790 = vmatmul.f32.gmra.mxu0 %v751
    %v791 = vpop.f32.mrf.mxu0
    %v792 = vadd.f32 %v736, %v791
    %793 = vmatmul.f32.gmra.mxu0 %v754
    %v794 = vpop.f32.mrf.mxu0
    %v795 = vadd.f32 %v736, %v794
    %796 = vmatmul.f32.gmra.mxu0 %v757
    %v797 = vpop.f32.mrf.mxu0
    %v798 = vadd.f32 %v736, %v797
    %799 = vmatmul.f32.gmra.mxu0 %v760
    %v800 = vpop.f32.mrf.mxu0
    %v801 = vadd.f32 %v736, %v800
    %802 = vdwg.mxu0
    %803 = vst [vmem:[#allocation2] sm:$0xff] %v780
    %804 = vst [vmem:[#allocation2 + $0x8] sm:$0xff] %v783
    %805 = vst [vmem:[#allocation2 + $0x10] sm:$0xff] %v786
    %806 = vst [vmem:[#allocation2 + $0x18] sm:$0xff] %v789
    %807 = vst [vmem:[#allocation2 + $0x20] sm:$0xff] %v792
    %808 = vst [vmem:[#allocation2 + $0x28] sm:$0xff] %v795
    %809 = vst [vmem:[#allocation2 + $0x30] sm:$0xff] %v798
    %810 = vst [vmem:[#allocation2 + $0x38] sm:$0xff] %v801
    %s811 = scalar_lea.vmem [#allocation4], 8
    %v812 = vld [vmem:[%s811] sm:$0xff]
    %s813 = scalar_lea.vmem [#allocation7], 8
    %v814 = vld [vmem:[%s813] sm:$0xff]
    %v815 = vld [vmem:[#allocation2] sm:$0xff]
    %v817 = vsel %vm95, %v812, 0
    %819 = vmatpush.msra.mxu0 0.0
    %820 = vmatpush.msra.mxu0 0.0
    %821 = vmatpush.msra.mxu0 0.0
    %822 = vmatpush.msra.mxu0 0.0
    %823 = vmatpush.msra.mxu0 0.0
    %824 = vmatpush.msra.mxu0 0.0
    %825 = vmatpush.msra.mxu0 0.0
    %826 = vmatpush.msra.mxu0 0.0
    %827 = vmatpush.msra.mxu0 0.0
    %828 = vmatpush.msra.mxu0 0.0
    %829 = vmatpush.msra.mxu0 0.0
    %830 = vmatpush.msra.mxu0 0.0
    %831 = vmatpush.msra.mxu0 %v725
    %832 = vmatpush.msra.mxu0 %v724
    %833 = vmatpush.msra.mxu0 %v723
    %834 = vmatpush.msra.mxu0 %v722
    %835 = vmatmul.f32.gmra.mxu0 %v817
    %v836 = vpop.f32.mrf.mxu0
    %v837 = vadd.f32 0.0, %v836
    %838 = vdwg.mxu0
    %v839 = vadd.f32 %v815, %v837
    %v840 = vxor.u32 %v839, 2147483648
    %v841 = vmul.f32 %v840, 1.442695
    %v842 = vpow.pop %v841
    %v843 = vadd.f32 %v842, 1.0
    %v844 = vrcp.pop %v843
    %v845 = vmul.f32 %v843, %v844
    %v846 = vsub.f32 1.0, %v845
    %v847 = vmul.f32 %v844, %v846
    %v848 = vadd.f32 %v844, %v847
    %vm849 = vweird.f32 %v843
    %vm850 = vweird.f32 %v844
    %vm851 = vmor %vm849, %vm850
    %v852 = vsel %vm851, %v844, %v848
    %v853 = vand.u32 2147483647, %v843
    %vm854 = vcmp.eq.f32.partialorder %v853, 8.507059e+37
    %v855 = vand.u32 %v843, 2147483648
    %v856 = vor.u32 1.1754944e-38, %v855
    %v857 = vsel %vm854, %v856, %v852
    %v858 = vmul.f32 1.0, %v857
    %v859 = vmul.f32 %v858, 2.0
    %v860 = vsub.f32 %v859, 1.0
    %862 = vrot.lane.b32.xlu0 %v814, 32
    %v863 = vpop.permute.xlu0 %862
    %v865 = vmul.f32 %v858, %v863
    %867 = vrot.lane.b32.xlu0 %v860, 64
    %v868 = vpop.permute.xlu0 %867
    %v870 = vmul.f32 %v858, %v868
    %872 = vrot.lane.b32.xlu0 %v870, 32
    %v873 = vpop.permute.xlu0 %872
    %v875 = vadd.f32 %v865, %v873
    %v876 = vtanh.pop %v875
    %878 = vrot.lane.b32.xlu0 %v876, 64
    %v879 = vpop.permute.xlu0 %878
    %v881 = vmul.f32 %v858, %v879
    %v882 = vld [vmem:[#allocation2 + $0x8] sm:$0xff]
    %884 = vrot.lane.b32.xlu0 %v881, 32
    %v885 = vpop.permute.xlu0 %884
    %v886 = vsel %vm95, %v885, 0
    %888 = vmatpush.msra.mxu0 0.0
    %889 = vmatpush.msra.mxu0 0.0
    %890 = vmatpush.msra.mxu0 0.0
    %891 = vmatpush.msra.mxu0 0.0
    %892 = vmatpush.msra.mxu0 0.0
    %893 = vmatpush.msra.mxu0 0.0
    %894 = vmatpush.msra.mxu0 0.0
    %895 = vmatpush.msra.mxu0 0.0
    %896 = vmatpush.msra.mxu0 0.0
    %897 = vmatpush.msra.mxu0 0.0
    %898 = vmatpush.msra.mxu0 0.0
    %899 = vmatpush.msra.mxu0 0.0
    %900 = vmatpush.msra.mxu0 %v725
    %901 = vmatpush.msra.mxu0 %v724
    %902 = vmatpush.msra.mxu0 %v723
    %903 = vmatpush.msra.mxu0 %v722
    %904 = vmatmul.f32.gmra.mxu0 %v886
    %v905 = vpop.f32.mrf.mxu0
    %v906 = vadd.f32 0.0, %v905
    %907 = vdwg.mxu0
    %v908 = vadd.f32 %v882, %v906
    %v909 = vxor.u32 %v908, 2147483648
    %v910 = vmul.f32 %v909, 1.442695
    %v911 = vpow.pop %v910
    %v912 = vadd.f32 %v911, 1.0
    %v913 = vrcp.pop %v912
    %v914 = vmul.f32 %v912, %v913
    %v915 = vsub.f32 1.0, %v914
    %v916 = vmul.f32 %v913, %v915
    %v917 = vadd.f32 %v913, %v916
    %vm918 = vweird.f32 %v912
    %vm919 = vweird.f32 %v913
    %vm920 = vmor %vm918, %vm919
    %v921 = vsel %vm920, %v913, %v917
    %v922 = vand.u32 2147483647, %v912
    %vm923 = vcmp.eq.f32.partialorder %v922, 8.507059e+37
    %v924 = vand.u32 %v912, 2147483648
    %v925 = vor.u32 1.1754944e-38, %v924
    %v926 = vsel %vm923, %v925, %v921
    %v927 = vmul.f32 1.0, %v926
    %v928 = vmul.f32 %v927, 2.0
    %v929 = vsub.f32 %v928, 1.0
    %v930 = vmul.f32 %v927, %v875
    %932 = vrot.lane.b32.xlu0 %v929, 64
    %v933 = vpop.permute.xlu0 %932
    %v935 = vmul.f32 %v927, %v933
    %937 = vrot.lane.b32.xlu0 %v935, 32
    %v938 = vpop.permute.xlu0 %937
    %v940 = vadd.f32 %v930, %v938
    %v941 = vtanh.pop %v940
    %943 = vrot.lane.b32.xlu0 %v941, 64
    %v944 = vpop.permute.xlu0 %943
    %v946 = vmul.f32 %v927, %v944
    %v947 = vld [vmem:[#allocation2 + $0x10] sm:$0xff]
    %949 = vrot.lane.b32.xlu0 %v946, 32
    %v950 = vpop.permute.xlu0 %949
    %v951 = vsel %vm95, %v950, 0
    %953 = vmatpush.msra.mxu0 0.0
    %954 = vmatpush.msra.mxu0 0.0
    %955 = vmatpush.msra.mxu0 0.0
    %956 = vmatpush.msra.mxu0 0.0
    %957 = vmatpush.msra.mxu0 0.0
    %958 = vmatpush.msra.mxu0 0.0
    %959 = vmatpush.msra.mxu0 0.0
    %960 = vmatpush.msra.mxu0 0.0
    %961 = vmatpush.msra.mxu0 0.0
    %962 = vmatpush.msra.mxu0 0.0
    %963 = vmatpush.msra.mxu0 0.0
    %964 = vmatpush.msra.mxu0 0.0
    %965 = vmatpush.msra.mxu0 %v725
    %966 = vmatpush.msra.mxu0 %v724
    %967 = vmatpush.msra.mxu0 %v723
    %968 = vmatpush.msra.mxu0 %v722
    %969 = vmatmul.f32.gmra.mxu0 %v951
    %v970 = vpop.f32.mrf.mxu0
    %v971 = vadd.f32 0.0, %v970
    %972 = vdwg.mxu0
    %v973 = vadd.f32 %v947, %v971
    %v974 = vxor.u32 %v973, 2147483648
    %v975 = vmul.f32 %v974, 1.442695
    %v976 = vpow.pop %v975
    %v977 = vadd.f32 %v976, 1.0
    %v978 = vrcp.pop %v977
    %v979 = vmul.f32 %v977, %v978
    %v980 = vsub.f32 1.0, %v979
    %v981 = vmul.f32 %v978, %v980
    %v982 = vadd.f32 %v978, %v981
    %vm983 = vweird.f32 %v977
    %vm984 = vweird.f32 %v978
    %vm985 = vmor %vm983, %vm984
    %v986 = vsel %vm985, %v978, %v982
    %v987 = vand.u32 2147483647, %v977
    %vm988 = vcmp.eq.f32.partialorder %v987, 8.507059e+37
    %v989 = vand.u32 %v977, 2147483648
    %v990 = vor.u32 1.1754944e-38, %v989
    %v991 = vsel %vm988, %v990, %v986
    %v992 = vmul.f32 1.0, %v991
    %v993 = vmul.f32 %v992, 2.0
    %v994 = vsub.f32 %v993, 1.0
    %v995 = vmul.f32 %v992, %v940
    %997 = vrot.lane.b32.xlu0 %v994, 64
    %v998 = vpop.permute.xlu0 %997
    %v1000 = vmul.f32 %v992, %v998
    %1002 = vrot.lane.b32.xlu0 %v1000, 32
    %v1003 = vpop.permute.xlu0 %1002
    %v1005 = vadd.f32 %v995, %v1003
    %v1006 = vtanh.pop %v1005
    %1008 = vrot.lane.b32.xlu0 %v1006, 64
    %v1009 = vpop.permute.xlu0 %1008
    %v1011 = vmul.f32 %v992, %v1009
    %v1012 = vld [vmem:[#allocation2 + $0x18] sm:$0xff]
    %1014 = vrot.lane.b32.xlu0 %v1011, 32
    %v1015 = vpop.permute.xlu0 %1014
    %v1016 = vsel %vm95, %v1015, 0
    %1018 = vmatpush.msra.mxu0 0.0
    %1019 = vmatpush.msra.mxu0 0.0
    %1020 = vmatpush.msra.mxu0 0.0
    %1021 = vmatpush.msra.mxu0 0.0
    %1022 = vmatpush.msra.mxu0 0.0
    %1023 = vmatpush.msra.mxu0 0.0
    %1024 = vmatpush.msra.mxu0 0.0
    %1025 = vmatpush.msra.mxu0 0.0
    %1026 = vmatpush.msra.mxu0 0.0
    %1027 = vmatpush.msra.mxu0 0.0
    %1028 = vmatpush.msra.mxu0 0.0
    %1029 = vmatpush.msra.mxu0 0.0
    %1030 = vmatpush.msra.mxu0 %v725
    %1031 = vmatpush.msra.mxu0 %v724
    %1032 = vmatpush.msra.mxu0 %v723
    %1033 = vmatpush.msra.mxu0 %v722
    %1034 = vmatmul.f32.gmra.mxu0 %v1016
    %v1035 = vpop.f32.mrf.mxu0
    %v1036 = vadd.f32 0.0, %v1035
    %1037 = vdwg.mxu0
    %v1038 = vadd.f32 %v1012, %v1036
    %v1039 = vxor.u32 %v1038, 2147483648
    %v1040 = vmul.f32 %v1039, 1.442695
    %v1041 = vpow.pop %v1040
    %v1042 = vadd.f32 %v1041, 1.0
    %v1043 = vrcp.pop %v1042
    %v1044 = vmul.f32 %v1042, %v1043
    %v1045 = vsub.f32 1.0, %v1044
    %v1046 = vmul.f32 %v1043, %v1045
    %v1047 = vadd.f32 %v1043, %v1046
    %vm1048 = vweird.f32 %v1042
    %vm1049 = vweird.f32 %v1043
    %vm1050 = vmor %vm1048, %vm1049
    %v1051 = vsel %vm1050, %v1043, %v1047
    %v1052 = vand.u32 2147483647, %v1042
    %vm1053 = vcmp.eq.f32.partialorder %v1052, 8.507059e+37
    %v1054 = vand.u32 %v1042, 2147483648
    %v1055 = vor.u32 1.1754944e-38, %v1054
    %v1056 = vsel %vm1053, %v1055, %v1051
    %v1057 = vmul.f32 1.0, %v1056
    %v1058 = vmul.f32 %v1057, 2.0
    %v1059 = vsub.f32 %v1058, 1.0
    %v1060 = vmul.f32 %v1057, %v1005
    %1062 = vrot.lane.b32.xlu0 %v1059, 64
    %v1063 = vpop.permute.xlu0 %1062
    %v1065 = vmul.f32 %v1057, %v1063
    %1067 = vrot.lane.b32.xlu0 %v1065, 32
    %v1068 = vpop.permute.xlu0 %1067
    %v1070 = vadd.f32 %v1060, %v1068
    %v1071 = vtanh.pop %v1070
    %1073 = vrot.lane.b32.xlu0 %v1071, 64
    %v1074 = vpop.permute.xlu0 %1073
    %v1076 = vmul.f32 %v1057, %v1074
    %v1077 = vld [vmem:[#allocation2 + $0x20] sm:$0xff]
    %1079 = vrot.lane.b32.xlu0 %v1076, 32
    %v1080 = vpop.permute.xlu0 %1079
    %v1081 = vsel %vm95, %v1080, 0
    %1083 = vmatpush.msra.mxu0 0.0
    %1084 = vmatpush.msra.mxu0 0.0
    %1085 = vmatpush.msra.mxu0 0.0
    %1086 = vmatpush.msra.mxu0 0.0
    %1087 = vmatpush.msra.mxu0 0.0
    %1088 = vmatpush.msra.mxu0 0.0
    %1089 = vmatpush.msra.mxu0 0.0
    %1090 = vmatpush.msra.mxu0 0.0
    %1091 = vmatpush.msra.mxu0 0.0
    %1092 = vmatpush.msra.mxu0 0.0
    %1093 = vmatpush.msra.mxu0 0.0
    %1094 = vmatpush.msra.mxu0 0.0
    %1095 = vmatpush.msra.mxu0 %v725
    %1096 = vmatpush.msra.mxu0 %v724
    %1097 = vmatpush.msra.mxu0 %v723
    %1098 = vmatpush.msra.mxu0 %v722
    %1099 = vmatmul.f32.gmra.mxu0 %v1081
    %v1100 = vpop.f32.mrf.mxu0
    %v1101 = vadd.f32 0.0, %v1100
    %1102 = vdwg.mxu0
    %v1103 = vadd.f32 %v1077, %v1101
    %v1104 = vxor.u32 %v1103, 2147483648
    %v1105 = vmul.f32 %v1104, 1.442695
    %v1106 = vpow.pop %v1105
    %v1107 = vadd.f32 %v1106, 1.0
    %v1108 = vrcp.pop %v1107
    %v1109 = vmul.f32 %v1107, %v1108
    %v1110 = vsub.f32 1.0, %v1109
    %v1111 = vmul.f32 %v1108, %v1110
    %v1112 = vadd.f32 %v1108, %v1111
    %vm1113 = vweird.f32 %v1107
    %vm1114 = vweird.f32 %v1108
    %vm1115 = vmor %vm1113, %vm1114
    %v1116 = vsel %vm1115, %v1108, %v1112
    %v1117 = vand.u32 2147483647, %v1107
    %vm1118 = vcmp.eq.f32.partialorder %v1117, 8.507059e+37
    %v1119 = vand.u32 %v1107, 2147483648
    %v1120 = vor.u32 1.1754944e-38, %v1119
    %v1121 = vsel %vm1118, %v1120, %v1116
    %v1122 = vmul.f32 1.0, %v1121
    %v1123 = vmul.f32 %v1122, 2.0
    %v1124 = vsub.f32 %v1123, 1.0
    %v1125 = vmul.f32 %v1122, %v1070
    %1127 = vrot.lane.b32.xlu0 %v1124, 64
    %v1128 = vpop.permute.xlu0 %1127
    %v1130 = vmul.f32 %v1122, %v1128
    %1132 = vrot.lane.b32.xlu0 %v1130, 32
    %v1133 = vpop.permute.xlu0 %1132
    %v1135 = vadd.f32 %v1125, %v1133
    %v1136 = vtanh.pop %v1135
    %1138 = vrot.lane.b32.xlu0 %v1136, 64
    %v1139 = vpop.permute.xlu0 %1138
    %v1141 = vmul.f32 %v1122, %v1139
    %v1142 = vld [vmem:[#allocation2 + $0x28] sm:$0xff]
    %1144 = vrot.lane.b32.xlu0 %v1141, 32
    %v1145 = vpop.permute.xlu0 %1144
    %v1146 = vsel %vm95, %v1145, 0
    %1148 = vmatpush.msra.mxu0 0.0
    %1149 = vmatpush.msra.mxu0 0.0
    %1150 = vmatpush.msra.mxu0 0.0
    %1151 = vmatpush.msra.mxu0 0.0
    %1152 = vmatpush.msra.mxu0 0.0
    %1153 = vmatpush.msra.mxu0 0.0
    %1154 = vmatpush.msra.mxu0 0.0
    %1155 = vmatpush.msra.mxu0 0.0
    %1156 = vmatpush.msra.mxu0 0.0
    %1157 = vmatpush.msra.mxu0 0.0
    %1158 = vmatpush.msra.mxu0 0.0
    %1159 = vmatpush.msra.mxu0 0.0
    %1160 = vmatpush.msra.mxu0 %v725
    %1161 = vmatpush.msra.mxu0 %v724
    %1162 = vmatpush.msra.mxu0 %v723
    %1163 = vmatpush.msra.mxu0 %v722
    %1164 = vmatmul.f32.gmra.mxu0 %v1146
    %v1165 = vpop.f32.mrf.mxu0
    %v1166 = vadd.f32 0.0, %v1165
    %1167 = vdwg.mxu0
    %v1168 = vadd.f32 %v1142, %v1166
    %v1169 = vxor.u32 %v1168, 2147483648
    %v1170 = vmul.f32 %v1169, 1.442695
    %v1171 = vpow.pop %v1170
    %v1172 = vadd.f32 %v1171, 1.0
    %v1173 = vrcp.pop %v1172
    %v1174 = vmul.f32 %v1172, %v1173
    %v1175 = vsub.f32 1.0, %v1174
    %v1176 = vmul.f32 %v1173, %v1175
    %v1177 = vadd.f32 %v1173, %v1176
    %vm1178 = vweird.f32 %v1172
    %vm1179 = vweird.f32 %v1173
    %vm1180 = vmor %vm1178, %vm1179
    %v1181 = vsel %vm1180, %v1173, %v1177
    %v1182 = vand.u32 2147483647, %v1172
    %vm1183 = vcmp.eq.f32.partialorder %v1182, 8.507059e+37
    %v1184 = vand.u32 %v1172, 2147483648
    %v1185 = vor.u32 1.1754944e-38, %v1184
    %v1186 = vsel %vm1183, %v1185, %v1181
    %v1187 = vmul.f32 1.0, %v1186
    %v1188 = vmul.f32 %v1187, 2.0
    %v1189 = vsub.f32 %v1188, 1.0
    %v1190 = vmul.f32 %v1187, %v1135
    %1192 = vrot.lane.b32.xlu0 %v1189, 64
    %v1193 = vpop.permute.xlu0 %1192
    %v1195 = vmul.f32 %v1187, %v1193
    %1197 = vrot.lane.b32.xlu0 %v1195, 32
    %v1198 = vpop.permute.xlu0 %1197
    %v1200 = vadd.f32 %v1190, %v1198
    %v1201 = vtanh.pop %v1200
    %1203 = vrot.lane.b32.xlu0 %v1201, 64
    %v1204 = vpop.permute.xlu0 %1203
    %v1206 = vmul.f32 %v1187, %v1204
    %v1207 = vld [vmem:[#allocation2 + $0x30] sm:$0xff]
    %1209 = vrot.lane.b32.xlu0 %v1206, 32
    %v1210 = vpop.permute.xlu0 %1209
    %v1211 = vsel %vm95, %v1210, 0
    %1213 = vmatpush.msra.mxu0 0.0
    %1214 = vmatpush.msra.mxu0 0.0
    %1215 = vmatpush.msra.mxu0 0.0
    %1216 = vmatpush.msra.mxu0 0.0
    %1217 = vmatpush.msra.mxu0 0.0
    %1218 = vmatpush.msra.mxu0 0.0
    %1219 = vmatpush.msra.mxu0 0.0
    %1220 = vmatpush.msra.mxu0 0.0
    %1221 = vmatpush.msra.mxu0 0.0
    %1222 = vmatpush.msra.mxu0 0.0
    %1223 = vmatpush.msra.mxu0 0.0
    %1224 = vmatpush.msra.mxu0 0.0
    %1225 = vmatpush.msra.mxu0 %v725
    %1226 = vmatpush.msra.mxu0 %v724
    %1227 = vmatpush.msra.mxu0 %v723
    %1228 = vmatpush.msra.mxu0 %v722
    %1229 = vmatmul.f32.gmra.mxu0 %v1211
    %v1230 = vpop.f32.mrf.mxu0
    %v1231 = vadd.f32 0.0, %v1230
    %1232 = vdwg.mxu0
    %v1233 = vadd.f32 %v1207, %v1231
    %v1234 = vxor.u32 %v1233, 2147483648
    %v1235 = vmul.f32 %v1234, 1.442695
    %v1236 = vpow.pop %v1235
    %v1237 = vadd.f32 %v1236, 1.0
    %v1238 = vrcp.pop %v1237
    %v1239 = vmul.f32 %v1237, %v1238
    %v1240 = vsub.f32 1.0, %v1239
    %v1241 = vmul.f32 %v1238, %v1240
    %v1242 = vadd.f32 %v1238, %v1241
    %vm1243 = vweird.f32 %v1237
    %vm1244 = vweird.f32 %v1238
    %vm1245 = vmor %vm1243, %vm1244
    %v1246 = vsel %vm1245, %v1238, %v1242
    %v1247 = vand.u32 2147483647, %v1237
    %vm1248 = vcmp.eq.f32.partialorder %v1247, 8.507059e+37
    %v1249 = vand.u32 %v1237, 2147483648
    %v1250 = vor.u32 1.1754944e-38, %v1249
    %v1251 = vsel %vm1248, %v1250, %v1246
    %v1252 = vmul.f32 1.0, %v1251
    %v1253 = vmul.f32 %v1252, 2.0
    %v1254 = vsub.f32 %v1253, 1.0
    %v1255 = vmul.f32 %v1252, %v1200
    %1257 = vrot.lane.b32.xlu0 %v1254, 64
    %v1258 = vpop.permute.xlu0 %1257
    %v1260 = vmul.f32 %v1252, %v1258
    %1262 = vrot.lane.b32.xlu0 %v1260, 32
    %v1263 = vpop.permute.xlu0 %1262
    %v1265 = vadd.f32 %v1255, %v1263
    %v1266 = vtanh.pop %v1265
    %1268 = vrot.lane.b32.xlu0 %v1266, 64
    %v1269 = vpop.permute.xlu0 %1268
    %v1271 = vmul.f32 %v1252, %v1269
    %v1272 = vld [vmem:[#allocation2 + $0x38] sm:$0xff]
    %1274 = vrot.lane.b32.xlu0 %v1271, 32
    %v1275 = vpop.permute.xlu0 %1274
    %v1276 = vsel %vm95, %v1275, 0
    %1278 = vmatpush.msra.mxu0 0.0
    %1279 = vmatpush.msra.mxu0 0.0
    %1280 = vmatpush.msra.mxu0 0.0
    %1281 = vmatpush.msra.mxu0 0.0
    %1282 = vmatpush.msra.mxu0 0.0
    %1283 = vmatpush.msra.mxu0 0.0
    %1284 = vmatpush.msra.mxu0 0.0
    %1285 = vmatpush.msra.mxu0 0.0
    %1286 = vmatpush.msra.mxu0 0.0
    %1287 = vmatpush.msra.mxu0 0.0
    %1288 = vmatpush.msra.mxu0 0.0
    %1289 = vmatpush.msra.mxu0 0.0
    %1290 = vmatpush.msra.mxu0 %v725
    %1291 = vmatpush.msra.mxu0 %v724
    %1292 = vmatpush.msra.mxu0 %v723
    %1293 = vmatpush.msra.mxu0 %v722
    %1294 = vmatmul.f32.gmra.mxu0 %v1276
    %v1295 = vpop.f32.mrf.mxu0
    %v1296 = vadd.f32 0.0, %v1295
    %1297 = vdwg.mxu0
    %v1298 = vadd.f32 %v1272, %v1296
    %v1299 = vxor.u32 %v1298, 2147483648
    %v1300 = vmul.f32 %v1299, 1.442695
    %v1301 = vpow.pop %v1300
    %v1302 = vadd.f32 %v1301, 1.0
    %v1303 = vrcp.pop %v1302
    %v1304 = vmul.f32 %v1302, %v1303
    %v1305 = vsub.f32 1.0, %v1304
    %v1306 = vmul.f32 %v1303, %v1305
    %v1307 = vadd.f32 %v1303, %v1306
    %vm1308 = vweird.f32 %v1302
    %vm1309 = vweird.f32 %v1303
    %vm1310 = vmor %vm1308, %vm1309
    %v1311 = vsel %vm1310, %v1303, %v1307
    %v1312 = vand.u32 2147483647, %v1302
    %vm1313 = vcmp.eq.f32.partialorder %v1312, 8.507059e+37
    %v1314 = vand.u32 %v1302, 2147483648
    %v1315 = vor.u32 1.1754944e-38, %v1314
    %v1316 = vsel %vm1313, %v1315, %v1311
    %v1317 = vmul.f32 1.0, %v1316
    %v1318 = vmul.f32 %v1317, 2.0
    %v1319 = vsub.f32 %v1318, 1.0
    %v1320 = vmul.f32 %v1317, %v1265
    %1322 = vrot.lane.b32.xlu0 %v1319, 64
    %v1323 = vpop.permute.xlu0 %1322
    %v1325 = vmul.f32 %v1317, %v1323
    %1327 = vrot.lane.b32.xlu0 %v1325, 32
    %v1328 = vpop.permute.xlu0 %1327
    %v1330 = vadd.f32 %v1320, %v1328
    %v1331 = vtanh.pop %v1330
    %1333 = vrot.lane.b32.xlu0 %v1331, 64
    %v1334 = vpop.permute.xlu0 %1333
    %v1336 = vmul.f32 %v1317, %v1334
    %1338 = vrot.lane.b32.xlu0 %v1336, 32
    %v1339 = vpop.permute.xlu0 %1338
    %s1341 = scalar_lea.vmem [#allocation10], 8
    %1342 = vst.msk [vmem:[%s1341] sm:$0xff] %vm95, %v1339
    %1344 = vrot.lane.b32.xlu0 %v1330, 96
    %v1345 = vpop.permute.xlu0 %1344
    %s1347 = scalar_lea.vmem [#allocation12], 8
    %1348 = vst.msk [vmem:[%s1347] sm:$0xff] %vm95, %v1345
    %v1349 = vld [vmem:[%s9] sm:$0xff]
    %v1350 = vld [vmem:[%s9 + $0x8] sm:$0xff]
    %v1351 = vld [vmem:[%s9 + $0x10] sm:$0xff]
    %v1352 = vld [vmem:[%s9 + $0x18] sm:$0xff]
    %v1353 = vld [vmem:[%s10] sm:$0x1]
    %v1355 = vperm.slane %v1353, 0
    %v1357 = vsel %vm95, %v1339, 0
    %1359 = vmatpush.msra.mxu0 0.0
    %1360 = vmatpush.msra.mxu0 0.0
    %1361 = vmatpush.msra.mxu0 0.0
    %1362 = vmatpush.msra.mxu0 0.0
    %1363 = vmatpush.msra.mxu0 0.0
    %1364 = vmatpush.msra.mxu0 0.0
    %1365 = vmatpush.msra.mxu0 0.0
    %1366 = vmatpush.msra.mxu0 0.0
    %1367 = vmatpush.msra.mxu0 0.0
    %1368 = vmatpush.msra.mxu0 0.0
    %1369 = vmatpush.msra.mxu0 0.0
    %1370 = vmatpush.msra.mxu0 0.0
    %1371 = vmatpush.msra.mxu0 %v1352
    %1372 = vmatpush.msra.mxu0 %v1351
    %1373 = vmatpush.msra.mxu0 %v1350
    %1374 = vmatpush.msra.mxu0 %v1349
    %1375 = vmatmul.f32.gmra.mxu0 %v1357
    %v1376 = vpop.f32.mrf.mxu0
    %v1377 = vadd.f32 %v1355, %v1376
    %1378 = vdwg.mxu0
    %vm1379 = vcmask 39936
    %v1380 = vsel %vm1379, %v1377, -inf
    %1381 = vmax.xlane.f32.xlu0 %v1380
    %v1382 = vpop.xlane.xlu0 %1381
    %v1383 = vsub.f32 %v1377, %v1382
    %v1384 = vmul.f32 %v1383, 1.442695
    %v1385 = vpow.pop %v1384
    %v1386 = vsel %vm1379, %v1385, 0.0
    %1387 = vadd.xlane.f32.xlu0 %v1386
    %v1388 = vpop.xlane.xlu0 %1387
    %v1389 = vlog2.pop %v1388
    %v1390 = vmul.f32 %v1389, 0.6931472
    %v1391 = vsub.f32 %v1383, %v1390
    %1392 = vst.msk [vmem:[#allocation9] sm:$0xff] %vm1379, %v1391
    // Predicated region
    $region54: #{tpu_custom_call.1} parent=1 // pred_check
      _
    $region55: #{tpu_custom_call.1} parent=1 // pred_check_branch
      %1394 = sbr.rel (0) target = $region57
    $region56: #{tpu_custom_call.1} parent=1 // pred_region
      %1396 = vsyncadd [#allocation6], 0
      %s1398 = sshll.u32 [#allocation9], 4
      %s1399 = int_to_ptr.vmem [resolvable:$true] %s1398
      %s1400 = sshll.u32 %s11, 4
      %s1401 = int_to_ptr.hbm [resolvable:$true] %s1400
      %1403 = dma.vmem_to_hbm [thread:$0]  %s1399, 128, %s1401, [#allocation6]
    $region57: #{tpu_custom_call.1} parent=1 // pred_fallthru
      _
    // Predicated region
    $region58: #{tpu_custom_call.1} parent=1 // pred_check
      _
    $region59: #{tpu_custom_call.1} parent=1 // pred_check_branch
      %1405 = sbr.rel (0) target = $region61
    $region60: #{tpu_custom_call.1} parent=1 // pred_region
      %1407 = vsyncadd [#allocation11], 0
      %s1408 = sshll.u32 [#allocation10], 4
      %s1409 = int_to_ptr.vmem [resolvable:$true] %s1408
      %s1410 = sshll.u32 %s12, 4
      %s1411 = int_to_ptr.hbm [resolvable:$true] %s1410
      %1416 = dma.vmem_to_hbm [thread:$0]  %s1409, 256, %s1411, [#allocation11], 128, 128, 8
    $region61: #{tpu_custom_call.1} parent=1 // pred_fallthru
      _
    // Predicated region
    $region62: #{tpu_custom_call.1} parent=1 // pred_check
      _
    $region63: #{tpu_custom_call.1} parent=1 // pred_check_branch
      %1418 = sbr.rel (0) target = $region65
    $region64: #{tpu_custom_call.1} parent=1 // pred_region
      %1420 = vsyncadd [#allocation11], 0
      %s1421 = sshll.u32 [#allocation12], 4
      %s1422 = int_to_ptr.vmem [resolvable:$true] %s1421
      %s1423 = sshll.u32 %s13, 4
      %s1424 = int_to_ptr.hbm [resolvable:$true] %s1423
      %1429 = dma.vmem_to_hbm [thread:$0]  %s1422, 256, %s1424, [#allocation11], 128, 128, 8
    $region65: #{tpu_custom_call.1} parent=1 // pred_fallthru
      _
    // Predicated region
    $region66: #{tpu_custom_call.1} parent=1 // pred_check
      _
    $region67: #{tpu_custom_call.1} parent=1 // pred_check_branch
      %1431 = sbr.rel (0) target = $region69
    $region68: #{tpu_custom_call.1} parent=1 // pred_region
      %1433 = dma.done [#allocation6], 128
    $region69: #{tpu_custom_call.1} parent=1 // pred_fallthru
      _
    // Predicated region
    $region70: #{tpu_custom_call.1} parent=1 // pred_check
      _
    $region71: #{tpu_custom_call.1} parent=1 // pred_check_branch
      %1435 = sbr.rel (0) target = $region73
    $region72: #{tpu_custom_call.1} parent=1 // pred_region
      %1437 = dma.done [#allocation11], 256
    $region73: #{tpu_custom_call.1} parent=1 // pred_fallthru
      _
    // Predicated region
    $region74: #{tpu_custom_call.1} parent=1 // pred_check
      _
    $region75: #{tpu_custom_call.1} parent=1 // pred_check_branch
      %1439 = sbr.rel (0) target = $region77
    $region76: #{tpu_custom_call.1} parent=1 // pred_region
      %1441 = dma.done [#allocation11], 256
    $region77: #{tpu_custom_call.1} parent=1 // pred_fallthru
      _
    %1442 = vsyncpa [#allocation5], 1
    %1443 = vsyncpa [#allocation8], 1
    %1444 = vsyncpa [#allocation6], 1
    %1445 = vsyncpa [#allocation11], 1

</llo_original>
